<compile_context>
chip_gen: v7x
topology: tpu7x:2x2x1
jax: 0.10.0
libtpu: 0.0.40
codegen_flags: <defaults>
</compile_context>

<pallas_src>
import functools
import math

import jax
import jax.numpy as jnp
from jax.experimental import pallas as pl
from jax.experimental.pallas import tpu as pltpu


# ----------------------------------------------------------------------------
# small helpers
# ----------------------------------------------------------------------------

def _round_up(x, m):
    return ((x + m - 1) // m) * m


def _pick_row_tile(m, desired):
    """Row tile: a multiple of 8, <= desired. Rows are padded up to a multiple of it."""
    if m <= desired:
        return _round_up(m, 8)
    top = (desired // 8) * 8
    cand = top
    while cand >= 8:
        if m % cand == 0:
            return cand
        cand -= 8
    return top        # no divisor: caller pads m up to a multiple of `top`


def _pick_col_tile(nout, k, itemsize, budget_bytes=24 << 20):
    """Output-column tile for the linear kernel. Full extent unless the resident
    (k x nout) weight slab would blow the per-call VMEM budget (large C on v7x)."""
    if nout % 128 != 0 or k * nout * itemsize <= budget_bytes:
        return nout
    tn = nout
    while tn > 128:
        tn -= 128
        if nout % tn == 0 and k * tn * itemsize <= budget_bytes:
            return tn
    return 128


def _pick_seq_tile(n_pad, desired):
    """Sequence tile: a multiple of 128 dividing n_pad (n_pad is a multiple of 128)."""
    t = min(desired, n_pad)
    t -= t % 128
    while t > 128 and n_pad % t != 0:
        t -= 128
    return max(t, 128)


def _vmem_limit(nbytes):
    """Scoped-VMEM request: estimate + slack, capped with headroom below the chip's
    physical per-core VMEM (v7x: 64 MiB -> ~52 MiB budget; v5e/v6e: 128 MiB -> 100 MiB)."""
    cap = 128 << 20
    try:
        cap = int(getattr(pltpu.get_tpu_info(), "vmem_capacity_bytes", cap))
    except Exception:
        pass
    budget = max(min(cap - (12 << 20), 100 << 20), 16 << 20)
    return int(min(max(nbytes + (4 << 20), 16 << 20), budget))


def _resident_spec(block_shape, index_map):
    """BlockSpec for a constant-index (resident) block: single-buffered when the
    installed Pallas supports pipeline_mode (halves its VMEM footprint on v7x)."""
    try:
        return pl.BlockSpec(block_shape, index_map, pipeline_mode=pl.Buffered(1))
    except Exception:
        return pl.BlockSpec(block_shape, index_map)


# ----------------------------------------------------------------------------
# kernel 1: row-tiled linear  y = x @ W + b  (resident weight slab, f32 accumulation)
# ----------------------------------------------------------------------------

def _linear_kernel(x_ref, w_ref, b_ref, o_ref):
    acc = jnp.dot(x_ref[...], w_ref[...], preferred_element_type=jnp.float32)
    o_ref[...] = (acc + b_ref[...].astype(jnp.float32)).astype(o_ref.dtype)


def _linear_pallas(x2d, w, b, *, tile_m=512):
    """x2d: (M, K); w: (K, N); b: (N,) -> (M, N)."""
    M, K = x2d.shape
    Kw, Nout = w.shape
    assert K == Kw, (K, Kw)
    itemsize = jnp.dtype(x2d.dtype).itemsize

    tm = _pick_row_tile(M, tile_m)
    Mp = _round_up(M, tm)
    if Mp != M:                                   # keep tiles (8,128)-aligned
        x2d = jnp.pad(x2d, ((0, Mp - M), (0, 0)))
    tn = _pick_col_tile(Nout, K, itemsize)

    b2 = b.reshape(1, Nout).astype(x2d.dtype)

    vmem = (2 * itemsize * (tm * K + tm * tn)     # double-buffered x / out tiles
            + itemsize * (K * tn + tn)            # resident weight + bias (single buf)
            + 4 * tm * tn)                        # f32 accumulator intermediate

    out = pl.pallas_call(
        _linear_kernel,
        out_shape=jax.ShapeDtypeStruct((Mp, Nout), x2d.dtype),
        grid_spec=pltpu.PrefetchScalarGridSpec(
            num_scalar_prefetch=0,
            # N-tile axis outermost so each weight column-slab stays resident across the
            # whole row sweep (a single HBM pass over the weight).
            grid=(Nout // tn, Mp // tm),
            in_specs=[
                pl.BlockSpec((tm, K), lambda j, i: (i, 0)),       # activation row tile
                _resident_spec((K, tn), lambda j, i: (0, j)),     # weight slab
                _resident_spec((1, tn), lambda j, i: (0, j)),     # bias
            ],
            out_specs=pl.BlockSpec((tm, tn), lambda j, i: (i, j)),
        ),
        compiler_params=pltpu.CompilerParams(
            dimension_semantics=("parallel", "parallel"),
            vmem_limit_bytes=_vmem_limit(vmem),
        ),
    )(x2d, w, b2)
    return out[:M] if Mp != M else out


# ----------------------------------------------------------------------------
# kernel 2: flash attention with online softmax (one (batch, head) per grid step)
# ----------------------------------------------------------------------------

def _flash_attn_kernel(q_ref, k_ref, v_ref, o_ref, qs_sc, m_sc, l_sc, acc_sc,
                       *, scale, tk, n_true, need_mask):
    kv_idx = pl.program_id(2)

    @pl.when(kv_idx == 0)
    def _init():
        # fold the softmax scale into q ONCE per q tile (not per kv step).
        qs_sc[...] = (q_ref[...].astype(jnp.float32) * scale).astype(qs_sc.dtype)
        m_sc[...] = jnp.full(m_sc.shape, -jnp.inf, m_sc.dtype)
        l_sc[...] = jnp.zeros(l_sc.shape, l_sc.dtype)
        acc_sc[...] = jnp.zeros(acc_sc.shape, acc_sc.dtype)

    # scores for this kv block: (1, tq, tk), f32 MXU accumulation
    s = jnp.einsum("bqd,bkd->bqk", qs_sc[...], k_ref[...],
                   preferred_element_type=jnp.float32)

    if need_mask:  # static flag: only emitted when the token axis was padded
        col = kv_idx * tk + jax.lax.broadcasted_iota(jnp.int32, s.shape, 2)
        s = jnp.where(col < n_true, s, jnp.float32(-1e30))

    m_prev = m_sc[...]
    m_new = jnp.maximum(m_prev, s.max(axis=-1, keepdims=True))
    alpha = jnp.exp(m_prev - m_new)                       # EUP exp
    p = jnp.exp(s - m_new)

    l_sc[...] = alpha * l_sc[...] + p.sum(axis=-1, keepdims=True)
    acc_sc[...] = alpha * acc_sc[...] + jnp.einsum(
        "bqk,bkd->bqd", p.astype(v_ref.dtype), v_ref[...],
        preferred_element_type=jnp.float32)
    m_sc[...] = m_new

    @pl.when(kv_idx == pl.num_programs(2) - 1)
    def _finalize():
        inv_l = pl.reciprocal(l_sc[...], approx=True)     # EUP reciprocal (free slot)
        o_ref[...] = (acc_sc[...] * inv_l).astype(o_ref.dtype)


def _flash_attention_call(args, in_specs, out_shape, out_spec, *,
                          grid, tq, tk, head_dim, n_true, n_pad, scale):
    dtype = args[0].dtype
    itemsize = jnp.dtype(dtype).itemsize
    D = head_dim
    vmem = (2 * itemsize * (2 * tq * D + 2 * tk * D)      # double-buffered q/out + k/v
            + itemsize * tq * D                           # scaled-q scratch
            + 4 * tq * (D + 2)                            # f32 acc / m / l scratch
            + (2 * 4 + itemsize) * tq * tk)               # f32 s, p + cast copy

    kernel = functools.partial(_flash_attn_kernel, scale=float(scale), tk=tk,
                               n_true=int(n_true), need_mask=bool(n_pad > n_true))
    return pl.pallas_call(
        kernel,
        out_shape=out_shape,
        grid_spec=pltpu.PrefetchScalarGridSpec(
            num_scalar_prefetch=0,
            grid=grid,                                     # kv (reduction) axis last
            in_specs=in_specs,
            out_specs=out_spec,
            scratch_shapes=[
                pltpu.VMEM((1, tq, D), dtype),             # scaled q (written at kv==0)
                pltpu.VMEM((1, tq, 1), jnp.float32),       # running row max
                pltpu.VMEM((1, tq, 1), jnp.float32),       # running denominator
                pltpu.VMEM((1, tq, D), jnp.float32),       # output accumulator
            ]),
        compiler_params=pltpu.CompilerParams(
            dimension_semantics=("parallel", "parallel", "arbitrary"),
            vmem_limit_bytes=_vmem_limit(vmem),
        ),
    )(*args)


def _attention_fused(qkv, *, num_heads, head_dim, n_true, scale, tile_q, tile_kv):
    """Lane-dense path (head_dim % 128 == 0): q/k/v are read straight out of the qkv
    projection output (B, N_pad, 3C) via the in_specs, and the result is written as a
    lane-dense (B, N_pad, C) slab ready for the proj kernel -> zero HBM transposes."""
    B, n_pad, c3 = qkv.shape
    H, D = num_heads, head_dim
    assert c3 == 3 * H * D
    tq = _pick_seq_tile(n_pad, tile_q)
    tk = _pick_seq_tile(n_pad, tile_kv)
    grid = (B * H, n_pad // tq, n_pad // tk)

    # qkv columns are ordered (c, h, d): block index along the last axis (units of D)
    # is c*H + h.  The same array is passed three times with different column blocks.
    q_spec = pl.BlockSpec((1, tq, D), lambda g, qi, ki: (g // H, qi, g % H))
    k_spec = pl.BlockSpec((1, tk, D), lambda g, qi, ki: (g // H, ki, H + g % H))
    v_spec = pl.BlockSpec((1, tk, D), lambda g, qi, ki: (g // H, ki, 2 * H + g % H))
    o_spec = pl.BlockSpec((1, tq, D), lambda g, qi, ki: (g // H, qi, g % H))

    out_shape = jax.ShapeDtypeStruct((B, n_pad, H * D), qkv.dtype)
    return _flash_attention_call(
        (qkv, qkv, qkv), [q_spec, k_spec, v_spec], out_shape, o_spec,
        grid=grid, tq=tq, tk=tk, head_dim=D, n_true=n_true, n_pad=n_pad, scale=scale)


def _attention_heads(q, k, v, *, n_true, scale, tile_q, tile_kv):
    """General path (head_dim not a multiple of 128): q/k/v laid out as (B*H, N_pad, D);
    one (batch, head) pair per leading grid step (tile_bh = 1 per review)."""
    BH, n_pad, D = q.shape
    tq = _pick_seq_tile(n_pad, tile_q)
    tk = _pick_seq_tile(n_pad, tile_kv)
    grid = (BH, n_pad // tq, n_pad // tk)

    q_spec = pl.BlockSpec((1, tq, D), lambda g, qi, ki: (g, qi, 0))
    k_spec = pl.BlockSpec((1, tk, D), lambda g, qi, ki: (g, ki, 0))
    v_spec = pl.BlockSpec((1, tk, D), lambda g, qi, ki: (g, ki, 0))
    o_spec = pl.BlockSpec((1, tq, D), lambda g, qi, ki: (g, qi, 0))

    out_shape = jax.ShapeDtypeStruct((BH, n_pad, D), q.dtype)
    return _flash_attention_call(
        (q, k, v), [q_spec, k_spec, v_spec], out_shape, o_spec,
        grid=grid, tq=tq, tk=tk, head_dim=D, n_true=n_true, n_pad=n_pad, scale=scale)


# ----------------------------------------------------------------------------
# full MultiHeadAttention forward
# ----------------------------------------------------------------------------

def mha_pallas(x, w_qkv, b_qkv, w_proj, b_proj, *, num_heads,
               tile_m=512, tile_q=256, tile_kv=256):
    """x: (B, N, C); w_qkv: (C, 3C); b_qkv: (3C,); w_proj: (C, C); b_proj: (C,)."""
    B, N, C = x.shape
    H = num_heads
    D = C // H
    assert H * D == C, "embed_dim must be divisible by num_heads"
    scale = D ** (-0.5)

    # Pad the token axis to a multiple of 128 so every tile stays (8,128)-aligned
    # (handles ViT's N = 197 etc.); padded kv columns are masked inside the kernel and
    # padded rows are sliced off at the end.
    n_pad = _round_up(N, 128)
    if n_pad != N:
        x = jnp.pad(x, ((0, 0), (0, n_pad - N), (0, 0)))
    M = B * n_pad

    # qkv projection (columns ordered (c, h, d) exactly like the PyTorch module)
    qkv2 = _linear_pallas(x.reshape(M, C), w_qkv, b_qkv, tile_m=tile_m)      # (M, 3C)

    if D % 128 == 0:
        # lane-dense fused path: head split expressed via in_specs, no HBM transposes.
        attn2 = _attention_fused(
            qkv2.reshape(B, n_pad, 3 * C), num_heads=H, head_dim=D, n_true=N,
            scale=scale, tile_q=tile_q, tile_kv=tile_kv).reshape(M, C)
    else:
        # head_dim < 128: fall back to the (B*H, N, D) layout (two XLA transposes and
        # lane-sparse D-wide blocks -- prefer head_dim = 128 models).
        qkv = qkv2.reshape(B, n_pad, 3, H, D).transpose(2, 0, 3, 1, 4)       # (3,B,H,N,D)
        q = qkv[0].reshape(B * H, n_pad, D)
        k = qkv[1].reshape(B * H, n_pad, D)
        v = qkv[2].reshape(B * H, n_pad, D)
        o = _attention_heads(q, k, v, n_true=N, scale=scale,
                             tile_q=tile_q, tile_kv=tile_kv)                 # (BH,Np,D)
        attn2 = o.reshape(B, H, n_pad, D).transpose(0, 2, 1, 3).reshape(M, C)

    # output projection (attn_drop / proj_drop are p = 0.0 -> identity)
    out = _linear_pallas(attn2, w_proj, b_proj, tile_m=tile_m).reshape(B, n_pad, C)
    return out[:, :N, :] if n_pad != N else out


# ----------------------------------------------------------------------------
# pure-JAX reference and deterministic PyTorch-style init (for the self-test)
# ----------------------------------------------------------------------------

def _init_linear(key, fan_in, fan_out, use_bias=True, dtype=jnp.float32):
    kw, kb = jax.random.split(key)
    bound_w = math.sqrt(3.0 / fan_in)                 # kaiming_uniform(a=sqrt(5))
    w = jax.random.uniform(kw, (fan_in, fan_out), dtype, -bound_w, bound_w)
    if use_bias:
        bound_b = 1.0 / math.sqrt(fan_in)
        b = jax.random.uniform(kb, (fan_out,), dtype, -bound_b, bound_b)
    else:
        b = jnp.zeros((fan_out,), dtype)
    return w, b


def _mha_ref(x, w_qkv, b_qkv, w_proj, b_proj, num_heads):
    B, N, C = x.shape
    H = num_heads
    D = C // H
    qkv = x @ w_qkv + b_qkv
    qkv = qkv.reshape(B, N, 3, H, D).transpose(2, 0, 3, 1, 4)
    q, k, v = qkv[0], qkv[1], qkv[2]
    s = jnp.einsum("bhqd,bhkd->bhqk", q, k) * (D ** (-0.5))
    a = jax.nn.softmax(s, axis=-1)
    o = jnp.einsum("bhqk,bhkd->bhqd", a, v)
    o = o.transpose(0, 2, 1, 3).reshape(B, N, C)
    return o @ w_proj + b_proj


if __name__ == "__main__":
    key = jax.random.PRNGKey(0)
    k1, k2, k3, k4 = jax.random.split(key, 4)

    # --- config 1: lane-dense head_dim = 128 -> fused, transpose-free path ------------
    B, N, C, H = 2, 128, 256, 2          # head_dim = 128
    x = jax.random.normal(k1, (B, N, C), jnp.float32)
    w_qkv, b_qkv = _init_linear(k2, C, 3 * C, use_bias=False)   # qkv_bias=False default
    w_proj, b_proj = _init_linear(k3, C, C, use_bias=True)

    out = jax.block_until_ready(
        mha_pallas(x, w_qkv, b_qkv, w_proj, b_proj, num_heads=H))
    ref = _mha_ref(x, w_qkv, b_qkv, w_proj, b_proj, H)
    assert out.shape == (B, N, C)
    # tolerance accounts for MXU default-precision (bf16-pass) f32 matmuls on TPU
    err = float(jnp.max(jnp.abs(out - ref)))
    assert jnp.allclose(out, ref, atol=6e-2, rtol=6e-2), f"f32 mismatch, max err {err}"

    # mixed precision: bf16 operands, f32 MXU accumulation
    cast = lambda a: a.astype(jnp.bfloat16)
    out_bf = jax.block_until_ready(
        mha_pallas(cast(x), cast(w_qkv), cast(b_qkv), cast(w_proj), cast(b_proj),
                   num_heads=H))
    assert out_bf.shape == (B, N, C)
    assert jnp.allclose(out_bf.astype(jnp.float32), ref, atol=2.5e-1, rtol=2.5e-1), \
        "bf16 mismatch vs reference"

    # --- config 2: ragged N + small head_dim -> general path with padding/masking -----
    B2, N2, C2, H2 = 1, 50, 64, 4        # head_dim = 16, N not a multiple of 8
    x2 = jax.random.normal(k4, (B2, N2, C2), jnp.float32)
    wq2, bq2 = _init_linear(k2, C2, 3 * C2, use_bias=False)
    wp2, bp2 = _init_linear(k3, C2, C2, use_bias=True)

    out2 = jax.block_until_ready(
        mha_pallas(x2, wq2, bq2, wp2, bp2, num_heads=H2))
    ref2 = _mha_ref(x2, wq2, bq2, wp2, bp2, H2)
    assert out2.shape == (B2, N2, C2)
    err2 = float(jnp.max(jnp.abs(out2 - ref2)))
    assert jnp.allclose(out2, ref2, atol=6e-2, rtol=6e-2), \
        f"ragged-N mismatch, max err {err2}"

    print("KERNEL_OK")
</pallas_src>

<mosaic_0001>
module attributes {stable_mosaic.version = 11 : i64} {
  func.func @_linear_kernel(%arg0: i32, %arg1: i32, %arg2: memref<256x256xf32, #tpu.memory_space<vmem>>, %arg3: memref<256x768xf32, #tpu.memory_space<vmem>>, %arg4: memref<1x768xf32, #tpu.memory_space<vmem>>, %arg5: memref<256x768xf32, #tpu.memory_space<vmem>>) attributes {dimension_semantics = [#tpu.dimension_semantics<parallel>, #tpu.dimension_semantics<parallel>], iteration_bounds = array<i64: 1, 1>, scalar_prefetch = 0 : i64, scratch_operands = 0 : i64, tpu.core_type = #tpu.core_type<tc>, window_params = [{transform_indices = @transform_0, window_bounds = array<i64: 256, 256>}, {pipeline_mode = #tpu.pipeline_mode<synchronous>, transform_indices = @transform_1, window_bounds = array<i64: 256, 768>}, {pipeline_mode = #tpu.pipeline_mode<synchronous>, transform_indices = @transform_2, window_bounds = array<i64: 1, 768>}, {transform_indices = @transform_3, window_bounds = array<i64: 256, 768>}]} {
    %c0 = arith.constant 0 : index
    %c0_0 = arith.constant 0 : index
    %0 = vector.load %arg2[%c0, %c0_0] : memref<256x256xf32, #tpu.memory_space<vmem>>, vector<256x256xf32>
    %c0_1 = arith.constant 0 : index
    %c0_2 = arith.constant 0 : index
    %1 = vector.load %arg3[%c0_1, %c0_2] : memref<256x768xf32, #tpu.memory_space<vmem>>, vector<256x768xf32>
    %cst = arith.constant dense<0.000000e+00> : vector<256x768xf32>
    %2 = tpu.matmul %0, %1, %cst {dimension_numbers = #tpu.dot_dimension_numbers<[1], [0], [0], [1], [0, 0, 1, 1], [], []>} : vector<256x256xf32>, vector<256x768xf32>, vector<256x768xf32> -> vector<256x768xf32>
    %c0_3 = arith.constant 0 : index
    %c0_4 = arith.constant 0 : index
    %3 = vector.load %arg4[%c0_3, %c0_4] : memref<1x768xf32, #tpu.memory_space<vmem>>, vector<1x768xf32>
    %4 = vector.broadcast %3 : vector<1x768xf32> to vector<256x768xf32>
    %5 = arith.addf %2, %4 : vector<256x768xf32>
    %c0_5 = arith.constant 0 : index
    %c0_6 = arith.constant 0 : index
    %6 = vector.load %arg5[%c0_5, %c0_6] : memref<256x768xf32, #tpu.memory_space<vmem>>, vector<256x768xf32>
    tpu.vector_store %arg5[%c0_5, %c0_6], %5 {strides = array<i32>} : memref<256x768xf32, #tpu.memory_space<vmem>>, vector<256x768xf32>,
    return
  }
  func.func @transform_0(%arg0: i32, %arg1: i32) -> (i32, i32) {
    %c0_i32 = arith.constant 0 : i32
    %c0_i32_0 = arith.constant 0 : i32
    return %arg1, %c0_i32 : i32, i32
  }
  func.func @transform_1(%arg0: i32, %arg1: i32) -> (i32, i32) {
    %c0_i32 = arith.constant 0 : i32
    %c0_i32_0 = arith.constant 0 : i32
    return %c0_i32, %arg0 : i32, i32
  }
  func.func @transform_2(%arg0: i32, %arg1: i32) -> (i32, i32) {
    %c0_i32 = arith.constant 0 : i32
    %c0_i32_0 = arith.constant 0 : i32
    return %c0_i32, %arg0 : i32, i32
  }
  func.func @transform_3(%arg0: i32, %arg1: i32) -> (i32, i32) {
    %c0_i32 = arith.constant 0 : i32
    return %arg1, %arg0 : i32, i32
  }
}

</mosaic_0001>

<llo_original>
// kernel: tpu_custom_call.1
$region0: #{tpu_custom_call.1}
  #allocation0 [shape = 'u32[]', space=smem, size = 0x4, offset = 0x4, fixed_abs, tag = 'smem constant byte address 0x4 - core index']
  #allocation1 [shape = 'u32[144,128]{1,0:T(1,128)}', space=vmem, size = 0x12000, scoped, tag = 'internal scratch']
  %s0 = inlined_call_operand.hbm [shape: f32[256,256], index: 0, kind: input, shape index: {}]
  %s1 = inlined_call_operand.hbm [shape: f32[256,768], index: 1, kind: input, shape index: {}]
  %s2 = inlined_call_operand.vmem [shape: f32[1,768], index: 2, kind: input, shape index: {}]
  %s3 = inlined_call_operand.hbm [shape: f32[256,768], index: 3, kind: output, shape index: {}]
  %s4 = sld [smem:[#allocation0]]
  $region30: #{tpu_custom_call.1} parent=0
    _
  %s6 = ssub.s32 1, %s4
  %s7 = scalar_select 0, %s6, %s4
  $region1: #{tpu_custom_call.1} parent=0
    #allocation2 [shape = 'u8[262144]{0}', space=vmem, size = 0x40000, scoped, tag = 'input window, operand 0, single buffered']
    #allocation3 [shape = 's32[1]{0}', space=sflag, size = 0x4, scoped, tag = 'scoped memory for tpu_custom_call.1']
    #allocation4 [shape = 's32[1]{0}', space=sflag, size = 0x4, scoped, tag = 'scoped memory for tpu_custom_call.1']
    #allocation5 [shape = 'u8[786432]{0}', space=vmem, size = 0xc0000, scoped, tag = 'input window, operand 1, single buffered']
    #allocation6 [shape = 's32[1]{0}', space=sflag, size = 0x4, scoped, tag = 'scoped memory for tpu_custom_call.1']
    #allocation7 [shape = 'u8[786432]{0}', space=vmem, size = 0xc0000, scoped, tag = 'output window, operand 0, single buffered']
    %8 = vsyncpa [#allocation3], 0
    %9 = vsyncpa [#allocation6], 0
    %10 = vsyncpa [#allocation4], 0
    // Predicated region
    $region2: #{tpu_custom_call.1} parent=1 // pred_check
      _
    $region3: #{tpu_custom_call.1} parent=1 // pred_check_branch
      %12 = sbr.rel (0) target = $region5
    $region4: #{tpu_custom_call.1} parent=1 // pred_region
      %s14 = ssub.s32 8192, 8192
      %15 = vsyncadd [#allocation3], %s14
      %s16 = sshll.u32 [#allocation2], 4
      %s17 = int_to_ptr.vmem [resolvable:$true] %s16
      %22 = dma.hbm_to_vmem [thread:$0]  %s0, 8192, %s17, [#allocation3], 256, 256, 16
    $region5: #{tpu_custom_call.1} parent=1 // pred_fallthru
      _
    // Predicated region
    $region6: #{tpu_custom_call.1} parent=1 // pred_check
      _
    $region7: #{tpu_custom_call.1} parent=1 // pred_check_branch
      %24 = sbr.rel (0) target = $region9
    $region8: #{tpu_custom_call.1} parent=1 // pred_region
      %s26 = ssub.s32 24576, 24576
      %27 = vsyncadd [#allocation6], %s26
      %s28 = sshll.u32 [#allocation5], 4
      %s29 = int_to_ptr.vmem [resolvable:$true] %s28
      %34 = dma.hbm_to_vmem [thread:$0]  %s1, 24576, %s29, [#allocation6], 768, 768, 48
    $region9: #{tpu_custom_call.1} parent=1 // pred_fallthru
      _
    // Predicated region
    $region10: #{tpu_custom_call.1} parent=1 // pred_check
      _
    $region11: #{tpu_custom_call.1} parent=1 // pred_check_branch
      %36 = sbr.rel (0) target = $region13
    $region12: #{tpu_custom_call.1} parent=1 // pred_region
      _
    $region13: #{tpu_custom_call.1} parent=1 // pred_fallthru
      _
    // Predicated region
    $region14: #{tpu_custom_call.1} parent=1 // pred_check
      _
    $region15: #{tpu_custom_call.1} parent=1 // pred_check_branch
      %38 = sbr.rel (0) target = $region17
    $region16: #{tpu_custom_call.1} parent=1 // pred_region
      %39 = dma.done [#allocation3], 8192
    $region17: #{tpu_custom_call.1} parent=1 // pred_fallthru
      _
    // Predicated region
    $region18: #{tpu_custom_call.1} parent=1 // pred_check
      _
    $region19: #{tpu_custom_call.1} parent=1 // pred_check_branch
      %41 = sbr.rel (0) target = $region21
    $region20: #{tpu_custom_call.1} parent=1 // pred_region
      %42 = dma.done [#allocation6], 24576
    $region21: #{tpu_custom_call.1} parent=1 // pred_fallthru
      _
    %v43 = vld [vmem:[#allocation2] sm:$0xff]
    %v44 = vld [vmem:[#allocation2 + $0x8] sm:$0xff]
    %v45 = vld [vmem:[#allocation2 + $0x10] sm:$0xff]
    %v46 = vld [vmem:[#allocation2 + $0x18] sm:$0xff]
    %v47 = vld [vmem:[#allocation2 + $0x20] sm:$0xff]
    %v48 = vld [vmem:[#allocation2 + $0x28] sm:$0xff]
    %v49 = vld [vmem:[#allocation2 + $0x30] sm:$0xff]
    %v50 = vld [vmem:[#allocation2 + $0x38] sm:$0xff]
    %v51 = vld [vmem:[#allocation2 + $0x40] sm:$0xff]
    %v52 = vld [vmem:[#allocation2 + $0x48] sm:$0xff]
    %v53 = vld [vmem:[#allocation2 + $0x50] sm:$0xff]
    %v54 = vld [vmem:[#allocation2 + $0x58] sm:$0xff]
    %v55 = vld [vmem:[#allocation2 + $0x60] sm:$0xff]
    %v56 = vld [vmem:[#allocation2 + $0x68] sm:$0xff]
    %v57 = vld [vmem:[#allocation2 + $0x70] sm:$0xff]
    %v58 = vld [vmem:[#allocation2 + $0x78] sm:$0xff]
    %v59 = vld [vmem:[#allocation2 + $0x80] sm:$0xff]
    %v60 = vld [vmem:[#allocation2 + $0x88] sm:$0xff]
    %v61 = vld [vmem:[#allocation2 + $0x90] sm:$0xff]
    %v62 = vld [vmem:[#allocation2 + $0x98] sm:$0xff]
    %v63 = vld [vmem:[#allocation2 + $0xa0] sm:$0xff]
    %v64 = vld [vmem:[#allocation2 + $0xa8] sm:$0xff]
    %v65 = vld [vmem:[#allocation2 + $0xb0] sm:$0xff]
    %v66 = vld [vmem:[#allocation2 + $0xb8] sm:$0xff]
    %v67 = vld [vmem:[#allocation2 + $0xc0] sm:$0xff]
    %v68 = vld [vmem:[#allocation2 + $0xc8] sm:$0xff]
    %v69 = vld [vmem:[#allocation2 + $0xd0] sm:$0xff]
    %v70 = vld [vmem:[#allocation2 + $0xd8] sm:$0xff]
    %v71 = vld [vmem:[#allocation2 + $0xe0] sm:$0xff]
    %v72 = vld [vmem:[#allocation2 + $0xe8] sm:$0xff]
    %v73 = vld [vmem:[#allocation2 + $0xf0] sm:$0xff]
    %v74 = vld [vmem:[#allocation2 + $0xf8] sm:$0xff]
    %v75 = vld [vmem:[#allocation2 + $0x100] sm:$0xff]
    %v76 = vld [vmem:[#allocation2 + $0x108] sm:$0xff]
    %v77 = vld [vmem:[#allocation2 + $0x110] sm:$0xff]
    %v78 = vld [vmem:[#allocation2 + $0x118] sm:$0xff]
    %v79 = vld [vmem:[#allocation2 + $0x120] sm:$0xff]
    %v80 = vld [vmem:[#allocation2 + $0x128] sm:$0xff]
    %v81 = vld [vmem:[#allocation2 + $0x130] sm:$0xff]
    %v82 = vld [vmem:[#allocation2 + $0x138] sm:$0xff]
    %v83 = vld [vmem:[#allocation2 + $0x140] sm:$0xff]
    %v84 = vld [vmem:[#allocation2 + $0x148] sm:$0xff]
    %v85 = vld [vmem:[#allocation2 + $0x150] sm:$0xff]
    %v86 = vld [vmem:[#allocation2 + $0x158] sm:$0xff]
    %v87 = vld [vmem:[#allocation2 + $0x160] sm:$0xff]
    %v88 = vld [vmem:[#allocation2 + $0x168] sm:$0xff]
    %v89 = vld [vmem:[#allocation2 + $0x170] sm:$0xff]
    %v90 = vld [vmem:[#allocation2 + $0x178] sm:$0xff]
    %v91 = vld [vmem:[#allocation2 + $0x180] sm:$0xff]
    %v92 = vld [vmem:[#allocation2 + $0x188] sm:$0xff]
    %v93 = vld [vmem:[#allocation2 + $0x190] sm:$0xff]
    %v94 = vld [vmem:[#allocation2 + $0x198] sm:$0xff]
    %v95 = vld [vmem:[#allocation2 + $0x1a0] sm:$0xff]
    %v96 = vld [vmem:[#allocation2 + $0x1a8] sm:$0xff]
    %v97 = vld [vmem:[#allocation2 + $0x1b0] sm:$0xff]
    %v98 = vld [vmem:[#allocation2 + $0x1b8] sm:$0xff]
    %v99 = vld [vmem:[#allocation2 + $0x1c0] sm:$0xff]
    %v100 = vld [vmem:[#allocation2 + $0x1c8] sm:$0xff]
    %v101 = vld [vmem:[#allocation2 + $0x1d0] sm:$0xff]
    %v102 = vld [vmem:[#allocation2 + $0x1d8] sm:$0xff]
    %v103 = vld [vmem:[#allocation2 + $0x1e0] sm:$0xff]
    %v104 = vld [vmem:[#allocation2 + $0x1e8] sm:$0xff]
    %v105 = vld [vmem:[#allocation2 + $0x1f0] sm:$0xff]
    %v106 = vld [vmem:[#allocation2 + $0x1f8] sm:$0xff]
    %v107 = vld [vmem:[#allocation5] sm:$0xff]
    %v108 = vld [vmem:[#allocation5 + $0x8] sm:$0xff]
    %v109 = vld [vmem:[#allocation5 + $0x10] sm:$0xff]
    %v110 = vld [vmem:[#allocation5 + $0x18] sm:$0xff]
    %v111 = vld [vmem:[#allocation5 + $0x20] sm:$0xff]
    %v112 = vld [vmem:[#allocation5 + $0x28] sm:$0xff]
    %v113 = vld [vmem:[#allocation5 + $0x30] sm:$0xff]
    %v114 = vld [vmem:[#allocation5 + $0x38] sm:$0xff]
    %v115 = vld [vmem:[#allocation5 + $0x40] sm:$0xff]
    %v116 = vld [vmem:[#allocation5 + $0x48] sm:$0xff]
    %v117 = vld [vmem:[#allocation5 + $0x50] sm:$0xff]
    %v118 = vld [vmem:[#allocation5 + $0x58] sm:$0xff]
    %v119 = vld [vmem:[#allocation5 + $0x60] sm:$0xff]
    %v120 = vld [vmem:[#allocation5 + $0x68] sm:$0xff]
    %v121 = vld [vmem:[#allocation5 + $0x70] sm:$0xff]
    %v122 = vld [vmem:[#allocation5 + $0x78] sm:$0xff]
    %v123 = vld [vmem:[#allocation5 + $0x80] sm:$0xff]
    %v124 = vld [vmem:[#allocation5 + $0x88] sm:$0xff]
    %v125 = vld [vmem:[#allocation5 + $0x90] sm:$0xff]
    %v126 = vld [vmem:[#allocation5 + $0x98] sm:$0xff]
    %v127 = vld [vmem:[#allocation5 + $0xa0] sm:$0xff]
    %v128 = vld [vmem:[#allocation5 + $0xa8] sm:$0xff]
    %v129 = vld [vmem:[#allocation5 + $0xb0] sm:$0xff]
    %v130 = vld [vmem:[#allocation5 + $0xb8] sm:$0xff]
    %v131 = vld [vmem:[#allocation5 + $0xc0] sm:$0xff]
    %v132 = vld [vmem:[#allocation5 + $0xc8] sm:$0xff]
    %v133 = vld [vmem:[#allocation5 + $0xd0] sm:$0xff]
    %v134 = vld [vmem:[#allocation5 + $0xd8] sm:$0xff]
    %v135 = vld [vmem:[#allocation5 + $0xe0] sm:$0xff]
    %v136 = vld [vmem:[#allocation5 + $0xe8] sm:$0xff]
    %v137 = vld [vmem:[#allocation5 + $0xf0] sm:$0xff]
    %v138 = vld [vmem:[#allocation5 + $0xf8] sm:$0xff]
    %v139 = vld [vmem:[#allocation5 + $0x100] sm:$0xff]
    %v140 = vld [vmem:[#allocation5 + $0x108] sm:$0xff]
    %v141 = vld [vmem:[#allocation5 + $0x110] sm:$0xff]
    %v142 = vld [vmem:[#allocation5 + $0x118] sm:$0xff]
    %v143 = vld [vmem:[#allocation5 + $0x120] sm:$0xff]
    %v144 = vld [vmem:[#allocation5 + $0x128] sm:$0xff]
    %v145 = vld [vmem:[#allocation5 + $0x130] sm:$0xff]
    %v146 = vld [vmem:[#allocation5 + $0x138] sm:$0xff]
    %v147 = vld [vmem:[#allocation5 + $0x140] sm:$0xff]
    %v148 = vld [vmem:[#allocation5 + $0x148] sm:$0xff]
    %v149 = vld [vmem:[#allocation5 + $0x150] sm:$0xff]
    %v150 = vld [vmem:[#allocation5 + $0x158] sm:$0xff]
    %v151 = vld [vmem:[#allocation5 + $0x160] sm:$0xff]
    %v152 = vld [vmem:[#allocation5 + $0x168] sm:$0xff]
    %v153 = vld [vmem:[#allocation5 + $0x170] sm:$0xff]
    %v154 = vld [vmem:[#allocation5 + $0x178] sm:$0xff]
    %v155 = vld [vmem:[#allocation5 + $0x180] sm:$0xff]
    %v156 = vld [vmem:[#allocation5 + $0x188] sm:$0xff]
    %v157 = vld [vmem:[#allocation5 + $0x190] sm:$0xff]
    %v158 = vld [vmem:[#allocation5 + $0x198] sm:$0xff]
    %v159 = vld [vmem:[#allocation5 + $0x1a0] sm:$0xff]
    %v160 = vld [vmem:[#allocation5 + $0x1a8] sm:$0xff]
    %v161 = vld [vmem:[#allocation5 + $0x1b0] sm:$0xff]
    %v162 = vld [vmem:[#allocation5 + $0x1b8] sm:$0xff]
    %v163 = vld [vmem:[#allocation5 + $0x1c0] sm:$0xff]
    %v164 = vld [vmem:[#allocation5 + $0x1c8] sm:$0xff]
    %v165 = vld [vmem:[#allocation5 + $0x1d0] sm:$0xff]
    %v166 = vld [vmem:[#allocation5 + $0x1d8] sm:$0xff]
    %v167 = vld [vmem:[#allocation5 + $0x1e0] sm:$0xff]
    %v168 = vld [vmem:[#allocation5 + $0x1e8] sm:$0xff]
    %v169 = vld [vmem:[#allocation5 + $0x1f0] sm:$0xff]
    %v170 = vld [vmem:[#allocation5 + $0x1f8] sm:$0xff]
    %v171 = vld [vmem:[#allocation5 + $0x200] sm:$0xff]
    %v172 = vld [vmem:[#allocation5 + $0x208] sm:$0xff]
    %v173 = vld [vmem:[#allocation5 + $0x210] sm:$0xff]
    %v174 = vld [vmem:[#allocation5 + $0x218] sm:$0xff]
    %v175 = vld [vmem:[#allocation5 + $0x220] sm:$0xff]
    %v176 = vld [vmem:[#allocation5 + $0x228] sm:$0xff]
    %v177 = vld [vmem:[#allocation5 + $0x230] sm:$0xff]
    %v178 = vld [vmem:[#allocation5 + $0x238] sm:$0xff]
    %v179 = vld [vmem:[#allocation5 + $0x240] sm:$0xff]
    %v180 = vld [vmem:[#allocation5 + $0x248] sm:$0xff]
    %v181 = vld [vmem:[#allocation5 + $0x250] sm:$0xff]
    %v182 = vld [vmem:[#allocation5 + $0x258] sm:$0xff]
    %v183 = vld [vmem:[#allocation5 + $0x260] sm:$0xff]
    %v184 = vld [vmem:[#allocation5 + $0x268] sm:$0xff]
    %v185 = vld [vmem:[#allocation5 + $0x270] sm:$0xff]
    %v186 = vld [vmem:[#allocation5 + $0x278] sm:$0xff]
    %v187 = vld [vmem:[#allocation5 + $0x280] sm:$0xff]
    %v188 = vld [vmem:[#allocation5 + $0x288] sm:$0xff]
    %v189 = vld [vmem:[#allocation5 + $0x290] sm:$0xff]
    %v190 = vld [vmem:[#allocation5 + $0x298] sm:$0xff]
    %v191 = vld [vmem:[#allocation5 + $0x2a0] sm:$0xff]
    %v192 = vld [vmem:[#allocation5 + $0x2a8] sm:$0xff]
    %v193 = vld [vmem:[#allocation5 + $0x2b0] sm:$0xff]
    %v194 = vld [vmem:[#allocation5 + $0x2b8] sm:$0xff]
    %v195 = vld [vmem:[#allocation5 + $0x2c0] sm:$0xff]
    %v196 = vld [vmem:[#allocation5 + $0x2c8] sm:$0xff]
    %v197 = vld [vmem:[#allocation5 + $0x2d0] sm:$0xff]
    %v198 = vld [vmem:[#allocation5 + $0x2d8] sm:$0xff]
    %v199 = vld [vmem:[#allocation5 + $0x2e0] sm:$0xff]
    %v200 = vld [vmem:[#allocation5 + $0x2e8] sm:$0xff]
    %v201 = vld [vmem:[#allocation5 + $0x2f0] sm:$0xff]
    %v202 = vld [vmem:[#allocation5 + $0x2f8] sm:$0xff]
    %v203 = vld [vmem:[#allocation5 + $0x300] sm:$0xff]
    %v204 = vld [vmem:[#allocation5 + $0x308] sm:$0xff]
    %v205 = vld [vmem:[#allocation5 + $0x310] sm:$0xff]
    %v206 = vld [vmem:[#allocation5 + $0x318] sm:$0xff]
    %v207 = vld [vmem:[#allocation5 + $0x320] sm:$0xff]
    %v208 = vld [vmem:[#allocation5 + $0x328] sm:$0xff]
    %v209 = vld [vmem:[#allocation5 + $0x330] sm:$0xff]
    %v210 = vld [vmem:[#allocation5 + $0x338] sm:$0xff]
    %v211 = vld [vmem:[#allocation5 + $0x340] sm:$0xff]
    %v212 = vld [vmem:[#allocation5 + $0x348] sm:$0xff]
    %v213 = vld [vmem:[#allocation5 + $0x350] sm:$0xff]
    %v214 = vld [vmem:[#allocation5 + $0x358] sm:$0xff]
    %v215 = vld [vmem:[#allocation5 + $0x360] sm:$0xff]
    %v216 = vld [vmem:[#allocation5 + $0x368] sm:$0xff]
    %v217 = vld [vmem:[#allocation5 + $0x370] sm:$0xff]
    %v218 = vld [vmem:[#allocation5 + $0x378] sm:$0xff]
    %v219 = vld [vmem:[#allocation5 + $0x380] sm:$0xff]
    %v220 = vld [vmem:[#allocation5 + $0x388] sm:$0xff]
    %v221 = vld [vmem:[#allocation5 + $0x390] sm:$0xff]
    %v222 = vld [vmem:[#allocation5 + $0x398] sm:$0xff]
    %v223 = vld [vmem:[#allocation5 + $0x3a0] sm:$0xff]
    %v224 = vld [vmem:[#allocation5 + $0x3a8] sm:$0xff]
    %v225 = vld [vmem:[#allocation5 + $0x3b0] sm:$0xff]
    %v226 = vld [vmem:[#allocation5 + $0x3b8] sm:$0xff]
    %v227 = vld [vmem:[#allocation5 + $0x3c0] sm:$0xff]
    %v228 = vld [vmem:[#allocation5 + $0x3c8] sm:$0xff]
    %v229 = vld [vmem:[#allocation5 + $0x3d0] sm:$0xff]
    %v230 = vld [vmem:[#allocation5 + $0x3d8] sm:$0xff]
    %v231 = vld [vmem:[#allocation5 + $0x3e0] sm:$0xff]
    %v232 = vld [vmem:[#allocation5 + $0x3e8] sm:$0xff]
    %v233 = vld [vmem:[#allocation5 + $0x3f0] sm:$0xff]
    %v234 = vld [vmem:[#allocation5 + $0x3f8] sm:$0xff]
    %v235 = vld [vmem:[#allocation5 + $0x400] sm:$0xff]
    %v236 = vld [vmem:[#allocation5 + $0x408] sm:$0xff]
    %v237 = vld [vmem:[#allocation5 + $0x410] sm:$0xff]
    %v238 = vld [vmem:[#allocation5 + $0x418] sm:$0xff]
    %v239 = vld [vmem:[#allocation5 + $0x420] sm:$0xff]
    %v240 = vld [vmem:[#allocation5 + $0x428] sm:$0xff]
    %v241 = vld [vmem:[#allocation5 + $0x430] sm:$0xff]
    %v242 = vld [vmem:[#allocation5 + $0x438] sm:$0xff]
    %v243 = vld [vmem:[#allocation5 + $0x440] sm:$0xff]
    %v244 = vld [vmem:[#allocation5 + $0x448] sm:$0xff]
    %v245 = vld [vmem:[#allocation5 + $0x450] sm:$0xff]
    %v246 = vld [vmem:[#allocation5 + $0x458] sm:$0xff]
    %v247 = vld [vmem:[#allocation5 + $0x460] sm:$0xff]
    %v248 = vld [vmem:[#allocation5 + $0x468] sm:$0xff]
    %v249 = vld [vmem:[#allocation5 + $0x470] sm:$0xff]
    %v250 = vld [vmem:[#allocation5 + $0x478] sm:$0xff]
    %v251 = vld [vmem:[#allocation5 + $0x480] sm:$0xff]
    %v252 = vld [vmem:[#allocation5 + $0x488] sm:$0xff]
    %v253 = vld [vmem:[#allocation5 + $0x490] sm:$0xff]
    %v254 = vld [vmem:[#allocation5 + $0x498] sm:$0xff]
    %v255 = vld [vmem:[#allocation5 + $0x4a0] sm:$0xff]
    %v256 = vld [vmem:[#allocation5 + $0x4a8] sm:$0xff]
    %v257 = vld [vmem:[#allocation5 + $0x4b0] sm:$0xff]
    %v258 = vld [vmem:[#allocation5 + $0x4b8] sm:$0xff]
    %v259 = vld [vmem:[#allocation5 + $0x4c0] sm:$0xff]
    %v260 = vld [vmem:[#allocation5 + $0x4c8] sm:$0xff]
    %v261 = vld [vmem:[#allocation5 + $0x4d0] sm:$0xff]
    %v262 = vld [vmem:[#allocation5 + $0x4d8] sm:$0xff]
    %v263 = vld [vmem:[#allocation5 + $0x4e0] sm:$0xff]
    %v264 = vld [vmem:[#allocation5 + $0x4e8] sm:$0xff]
    %v265 = vld [vmem:[#allocation5 + $0x4f0] sm:$0xff]
    %v266 = vld [vmem:[#allocation5 + $0x4f8] sm:$0xff]
    %v267 = vld [vmem:[#allocation5 + $0x500] sm:$0xff]
    %v268 = vld [vmem:[#allocation5 + $0x508] sm:$0xff]
    %v269 = vld [vmem:[#allocation5 + $0x510] sm:$0xff]
    %v270 = vld [vmem:[#allocation5 + $0x518] sm:$0xff]
    %v271 = vld [vmem:[#allocation5 + $0x520] sm:$0xff]
    %v272 = vld [vmem:[#allocation5 + $0x528] sm:$0xff]
    %v273 = vld [vmem:[#allocation5 + $0x530] sm:$0xff]
    %v274 = vld [vmem:[#allocation5 + $0x538] sm:$0xff]
    %v275 = vld [vmem:[#allocation5 + $0x540] sm:$0xff]
    %v276 = vld [vmem:[#allocation5 + $0x548] sm:$0xff]
    %v277 = vld [vmem:[#allocation5 + $0x550] sm:$0xff]
    %v278 = vld [vmem:[#allocation5 + $0x558] sm:$0xff]
    %v279 = vld [vmem:[#allocation5 + $0x560] sm:$0xff]
    %v280 = vld [vmem:[#allocation5 + $0x568] sm:$0xff]
    %v281 = vld [vmem:[#allocation5 + $0x570] sm:$0xff]
    %v282 = vld [vmem:[#allocation5 + $0x578] sm:$0xff]
    %v283 = vld [vmem:[#allocation5 + $0x580] sm:$0xff]
    %v284 = vld [vmem:[#allocation5 + $0x588] sm:$0xff]
    %v285 = vld [vmem:[#allocation5 + $0x590] sm:$0xff]
    %v286 = vld [vmem:[#allocation5 + $0x598] sm:$0xff]
    %v287 = vld [vmem:[#allocation5 + $0x5a0] sm:$0xff]
    %v288 = vld [vmem:[#allocation5 + $0x5a8] sm:$0xff]
    %v289 = vld [vmem:[#allocation5 + $0x5b0] sm:$0xff]
    %v290 = vld [vmem:[#allocation5 + $0x5b8] sm:$0xff]
    %v291 = vld [vmem:[#allocation5 + $0x5c0] sm:$0xff]
    %v292 = vld [vmem:[#allocation5 + $0x5c8] sm:$0xff]
    %v293 = vld [vmem:[#allocation5 + $0x5d0] sm:$0xff]
    %v294 = vld [vmem:[#allocation5 + $0x5d8] sm:$0xff]
    %v295 = vld [vmem:[#allocation5 + $0x5e0] sm:$0xff]
    %v296 = vld [vmem:[#allocation5 + $0x5e8] sm:$0xff]
    %v297 = vld [vmem:[#allocation5 + $0x5f0] sm:$0xff]
    %v298 = vld [vmem:[#allocation5 + $0x5f8] sm:$0xff]
    %v299 = vld [vmem:[%s2] sm:$0x3f]
    %v301 = vlaneseq
    %v302 = vshrl.u32 %v301, 7
    %v303 = vsub.s32 0, %v302
    %v304 = vrot.slane %v299, %v303
    %v305 = vlaneseq
    %v306 = vshrl.u32 %v305, 7
    %v307 = vsub.s32 1, %v306
    %v308 = vrot.slane %v299, %v307
    %v309 = vlaneseq
    %v310 = vshrl.u32 %v309, 7
    %v311 = vsub.s32 2, %v310
    %v312 = vrot.slane %v299, %v311
    %v313 = vlaneseq
    %v314 = vshrl.u32 %v313, 7
    %v315 = vsub.s32 3, %v314
    %v316 = vrot.slane %v299, %v315
    %v317 = vlaneseq
    %v318 = vshrl.u32 %v317, 7
    %v319 = vsub.s32 4, %v318
    %v320 = vrot.slane %v299, %v319
    %v321 = vlaneseq
    %v322 = vshrl.u32 %v321, 7
    %v323 = vsub.s32 5, %v322
    %v324 = vrot.slane %v299, %v323
    %331 = vmatprep.subr.mxu0 %v108
    %332 = vmatpush1.msra.mxu0 %v107
    %333 = vmatprep.subr.mxu0 %v114
    %334 = vmatpush1.msra.mxu0 %v113
    %335 = vmatprep.subr.mxu0 %v120
    %336 = vmatpush1.msra.mxu0 %v119
    %337 = vmatprep.subr.mxu0 %v126
    %338 = vmatpush1.msra.mxu0 %v125
    %339 = vmatprep.subr.mxu0 %v132
    %340 = vmatpush1.msra.mxu0 %v131
    %341 = vmatprep.subr.mxu0 %v138
    %342 = vmatpush1.msra.mxu0 %v137
    %343 = vmatprep.subr.mxu0 %v144
    %344 = vmatpush1.msra.mxu0 %v143
    %345 = vmatprep.subr.mxu0 %v150
    %346 = vmatpush1.msra.mxu0 %v149
    %347 = vmatprep.subr.mxu0 %v156
    %348 = vmatpush1.msra.mxu0 %v155
    %349 = vmatprep.subr.mxu0 %v162
    %350 = vmatpush1.msra.mxu0 %v161
    %351 = vmatprep.subr.mxu0 %v168
    %352 = vmatpush1.msra.mxu0 %v167
    %353 = vmatprep.subr.mxu0 %v174
    %354 = vmatpush1.msra.mxu0 %v173
    %355 = vmatprep.subr.mxu0 %v180
    %356 = vmatpush1.msra.mxu0 %v179
    %357 = vmatprep.subr.mxu0 %v186
    %358 = vmatpush1.msra.mxu0 %v185
    %359 = vmatprep.subr.mxu0 %v192
    %360 = vmatpush1.msra.mxu0 %v191
    %361 = vmatprep.subr.mxu0 %v198
    %362 = vmatpush1.msra.mxu0 %v197
    %363 = vmatprep.subr.mxu0 %v204
    %364 = vmatpush1.msra.mxu0 %v203
    %365 = vmatprep.subr.mxu0 %v210
    %366 = vmatpush1.msra.mxu0 %v209
    %367 = vmatprep.subr.mxu0 %v216
    %368 = vmatpush1.msra.mxu0 %v215
    %369 = vmatprep.subr.mxu0 %v222
    %370 = vmatpush1.msra.mxu0 %v221
    %371 = vmatprep.subr.mxu0 %v228
    %372 = vmatpush1.msra.mxu0 %v227
    %373 = vmatprep.subr.mxu0 %v234
    %374 = vmatpush1.msra.mxu0 %v233
    %375 = vmatprep.subr.mxu0 %v240
    %376 = vmatpush1.msra.mxu0 %v239
    %377 = vmatprep.subr.mxu0 %v246
    %378 = vmatpush1.msra.mxu0 %v245
    %379 = vmatprep.subr.mxu0 %v252
    %380 = vmatpush1.msra.mxu0 %v251
    %381 = vmatprep.subr.mxu0 %v258
    %382 = vmatpush1.msra.mxu0 %v257
    %383 = vmatprep.subr.mxu0 %v264
    %384 = vmatpush1.msra.mxu0 %v263
    %385 = vmatprep.subr.mxu0 %v270
    %386 = vmatpush1.msra.mxu0 %v269
    %387 = vmatprep.subr.mxu0 %v276
    %388 = vmatpush1.msra.mxu0 %v275
    %389 = vmatprep.subr.mxu0 %v282
    %390 = vmatpush1.msra.mxu0 %v281
    %391 = vmatprep.subr.mxu0 %v288
    %392 = vmatpush1.msra.mxu0 %v287
    %393 = vmatprep.subr.mxu0 %v294
    %394 = vmatpush1.msra.mxu0 %v293
    %395 = vmatprep.mubr.f32.mxu0 %v44
    %396 = vmatmul.mubr.f32.gmra.mrb[0].mxu0 %v43
    %v397 = vpop.f32.mrb[0].mxu0
    %v398 = vadd.f32 %v304, %v397
    %v399 = vpop.f32.mrb[0].mxu0
    %v400 = vadd.f32 %v308, %v399
    %401 = vmatprep.mubr.f32.mxu0 %v46
    %402 = vmatmul.mubr.f32.gmra.mrb[0].mxu0 %v45
    %v403 = vpop.f32.mrb[0].mxu0
    %v404 = vadd.f32 %v304, %v403
    %v405 = vpop.f32.mrb[0].mxu0
    %v406 = vadd.f32 %v308, %v405
    %407 = vmatprep.mubr.f32.mxu0 %v48
    %408 = vmatmul.mubr.f32.gmra.mrb[0].mxu0 %v47
    %v409 = vpop.f32.mrb[0].mxu0
    %v410 = vadd.f32 %v304, %v409
    %v411 = vpop.f32.mrb[0].mxu0
    %v412 = vadd.f32 %v308, %v411
    %413 = vmatprep.mubr.f32.mxu0 %v50
    %414 = vmatmul.mubr.f32.gmra.mrb[0].mxu0 %v49
    %v415 = vpop.f32.mrb[0].mxu0
    %v416 = vadd.f32 %v304, %v415
    %v417 = vpop.f32.mrb[0].mxu0
    %v418 = vadd.f32 %v308, %v417
    %419 = vmatprep.mubr.f32.mxu0 %v52
    %420 = vmatmul.mubr.f32.gmra.mrb[0].mxu0 %v51
    %v421 = vpop.f32.mrb[0].mxu0
    %v422 = vadd.f32 %v304, %v421
    %v423 = vpop.f32.mrb[0].mxu0
    %v424 = vadd.f32 %v308, %v423
    %425 = vmatprep.mubr.f32.mxu0 %v54
    %426 = vmatmul.mubr.f32.gmra.mrb[0].mxu0 %v53
    %v427 = vpop.f32.mrb[0].mxu0
    %v428 = vadd.f32 %v304, %v427
    %v429 = vpop.f32.mrb[0].mxu0
    %v430 = vadd.f32 %v308, %v429
    %431 = vmatprep.mubr.f32.mxu0 %v56
    %432 = vmatmul.mubr.f32.gmra.mrb[0].mxu0 %v55
    %v433 = vpop.f32.mrb[0].mxu0
    %v434 = vadd.f32 %v304, %v433
    %v435 = vpop.f32.mrb[0].mxu0
    %v436 = vadd.f32 %v308, %v435
    %437 = vmatprep.mubr.f32.mxu0 %v58
    %438 = vmatmul.mubr.f32.gmra.mrb[0].mxu0 %v57
    %v439 = vpop.f32.mrb[0].mxu0
    %v440 = vadd.f32 %v304, %v439
    %v441 = vpop.f32.mrb[0].mxu0
    %v442 = vadd.f32 %v308, %v441
    %443 = vmatprep.mubr.f32.mxu0 %v60
    %444 = vmatmul.mubr.f32.gmra.mrb[0].mxu0 %v59
    %v445 = vpop.f32.mrb[0].mxu0
    %v446 = vadd.f32 %v304, %v445
    %v447 = vpop.f32.mrb[0].mxu0
    %v448 = vadd.f32 %v308, %v447
    %449 = vmatprep.mubr.f32.mxu0 %v62
    %450 = vmatmul.mubr.f32.gmra.mrb[0].mxu0 %v61
    %v451 = vpop.f32.mrb[0].mxu0
    %v452 = vadd.f32 %v304, %v451
    %v453 = vpop.f32.mrb[0].mxu0
    %v454 = vadd.f32 %v308, %v453
    %455 = vmatprep.mubr.f32.mxu0 %v64
    %456 = vmatmul.mubr.f32.gmra.mrb[0].mxu0 %v63
    %v457 = vpop.f32.mrb[0].mxu0
    %v458 = vadd.f32 %v304, %v457
    %v459 = vpop.f32.mrb[0].mxu0
    %v460 = vadd.f32 %v308, %v459
    %461 = vmatprep.mubr.f32.mxu0 %v66
    %462 = vmatmul.mubr.f32.gmra.mrb[0].mxu0 %v65
    %v463 = vpop.f32.mrb[0].mxu0
    %v464 = vadd.f32 %v304, %v463
    %v465 = vpop.f32.mrb[0].mxu0
    %v466 = vadd.f32 %v308, %v465
    %467 = vmatprep.mubr.f32.mxu0 %v68
    %468 = vmatmul.mubr.f32.gmra.mrb[0].mxu0 %v67
    %v469 = vpop.f32.mrb[0].mxu0
    %v470 = vadd.f32 %v304, %v469
    %v471 = vpop.f32.mrb[0].mxu0
    %v472 = vadd.f32 %v308, %v471
    %473 = vmatprep.mubr.f32.mxu0 %v70
    %474 = vmatmul.mubr.f32.gmra.mrb[0].mxu0 %v69
    %v475 = vpop.f32.mrb[0].mxu0
    %v476 = vadd.f32 %v304, %v475
    %v477 = vpop.f32.mrb[0].mxu0
    %v478 = vadd.f32 %v308, %v477
    %479 = vmatprep.mubr.f32.mxu0 %v72
    %480 = vmatmul.mubr.f32.gmra.mrb[0].mxu0 %v71
    %v481 = vpop.f32.mrb[0].mxu0
    %v482 = vadd.f32 %v304, %v481
    %v483 = vpop.f32.mrb[0].mxu0
    %v484 = vadd.f32 %v308, %v483
    %485 = vmatprep.mubr.f32.mxu0 %v74
    %486 = vmatmul.mubr.f32.gmra.mrb[0].mxu0 %v73
    %v487 = vpop.f32.mrb[0].mxu0
    %v488 = vadd.f32 %v304, %v487
    %v489 = vpop.f32.mrb[0].mxu0
    %v490 = vadd.f32 %v308, %v489
    %491 = vmatprep.mubr.f32.mxu0 %v76
    %492 = vmatmul.mubr.f32.gmra.mrb[0].mxu0 %v75
    %v493 = vpop.f32.mrb[0].mxu0
    %v494 = vadd.f32 %v304, %v493
    %v495 = vpop.f32.mrb[0].mxu0
    %v496 = vadd.f32 %v308, %v495
    %497 = vmatprep.mubr.f32.mxu0 %v78
    %498 = vmatmul.mubr.f32.gmra.mrb[0].mxu0 %v77
    %v499 = vpop.f32.mrb[0].mxu0
    %v500 = vadd.f32 %v304, %v499
    %v501 = vpop.f32.mrb[0].mxu0
    %v502 = vadd.f32 %v308, %v501
    %503 = vmatprep.mubr.f32.mxu0 %v80
    %504 = vmatmul.mubr.f32.gmra.mrb[0].mxu0 %v79
    %v505 = vpop.f32.mrb[0].mxu0
    %v506 = vadd.f32 %v304, %v505
    %v507 = vpop.f32.mrb[0].mxu0
    %v508 = vadd.f32 %v308, %v507
    %509 = vmatprep.mubr.f32.mxu0 %v82
    %510 = vmatmul.mubr.f32.gmra.mrb[0].mxu0 %v81
    %v511 = vpop.f32.mrb[0].mxu0
    %v512 = vadd.f32 %v304, %v511
    %v513 = vpop.f32.mrb[0].mxu0
    %v514 = vadd.f32 %v308, %v513
    %515 = vmatprep.mubr.f32.mxu0 %v84
    %516 = vmatmul.mubr.f32.gmra.mrb[0].mxu0 %v83
    %v517 = vpop.f32.mrb[0].mxu0
    %v518 = vadd.f32 %v304, %v517
    %v519 = vpop.f32.mrb[0].mxu0
    %v520 = vadd.f32 %v308, %v519
    %521 = vmatprep.mubr.f32.mxu0 %v86
    %522 = vmatmul.mubr.f32.gmra.mrb[0].mxu0 %v85
    %v523 = vpop.f32.mrb[0].mxu0
    %v524 = vadd.f32 %v304, %v523
    %v525 = vpop.f32.mrb[0].mxu0
    %v526 = vadd.f32 %v308, %v525
    %527 = vmatprep.mubr.f32.mxu0 %v88
    %528 = vmatmul.mubr.f32.gmra.mrb[0].mxu0 %v87
    %v529 = vpop.f32.mrb[0].mxu0
    %v530 = vadd.f32 %v304, %v529
    %v531 = vpop.f32.mrb[0].mxu0
    %v532 = vadd.f32 %v308, %v531
    %533 = vmatprep.mubr.f32.mxu0 %v90
    %534 = vmatmul.mubr.f32.gmra.mrb[0].mxu0 %v89
    %v535 = vpop.f32.mrb[0].mxu0
    %v536 = vadd.f32 %v304, %v535
    %v537 = vpop.f32.mrb[0].mxu0
    %v538 = vadd.f32 %v308, %v537
    %539 = vmatprep.mubr.f32.mxu0 %v92
    %540 = vmatmul.mubr.f32.gmra.mrb[0].mxu0 %v91
    %v541 = vpop.f32.mrb[0].mxu0
    %v542 = vadd.f32 %v304, %v541
    %v543 = vpop.f32.mrb[0].mxu0
    %v544 = vadd.f32 %v308, %v543
    %545 = vmatprep.mubr.f32.mxu0 %v94
    %546 = vmatmul.mubr.f32.gmra.mrb[0].mxu0 %v93
    %v547 = vpop.f32.mrb[0].mxu0
    %v548 = vadd.f32 %v304, %v547
    %v549 = vpop.f32.mrb[0].mxu0
    %v550 = vadd.f32 %v308, %v549
    %551 = vmatprep.mubr.f32.mxu0 %v96
    %552 = vmatmul.mubr.f32.gmra.mrb[0].mxu0 %v95
    %v553 = vpop.f32.mrb[0].mxu0
    %v554 = vadd.f32 %v304, %v553
    %v555 = vpop.f32.mrb[0].mxu0
    %v556 = vadd.f32 %v308, %v555
    %557 = vmatprep.mubr.f32.mxu0 %v98
    %558 = vmatmul.mubr.f32.gmra.mrb[0].mxu0 %v97
    %v559 = vpop.f32.mrb[0].mxu0
    %v560 = vadd.f32 %v304, %v559
    %v561 = vpop.f32.mrb[0].mxu0
    %v562 = vadd.f32 %v308, %v561
    %563 = vmatprep.mubr.f32.mxu0 %v100
    %564 = vmatmul.mubr.f32.gmra.mrb[0].mxu0 %v99
    %v565 = vpop.f32.mrb[0].mxu0
    %v566 = vadd.f32 %v304, %v565
    %v567 = vpop.f32.mrb[0].mxu0
    %v568 = vadd.f32 %v308, %v567
    %569 = vmatprep.mubr.f32.mxu0 %v102
    %570 = vmatmul.mubr.f32.gmra.mrb[0].mxu0 %v101
    %v571 = vpop.f32.mrb[0].mxu0
    %v572 = vadd.f32 %v304, %v571
    %v573 = vpop.f32.mrb[0].mxu0
    %v574 = vadd.f32 %v308, %v573
    %575 = vmatprep.mubr.f32.mxu0 %v104
    %576 = vmatmul.mubr.f32.gmra.mrb[0].mxu0 %v103
    %v577 = vpop.f32.mrb[0].mxu0
    %v578 = vadd.f32 %v304, %v577
    %v579 = vpop.f32.mrb[0].mxu0
    %v580 = vadd.f32 %v308, %v579
    %581 = vmatprep.mubr.f32.mxu0 %v106
    %582 = vmatmul.mubr.f32.gmra.mrb[0].mxu0 %v105
    %v583 = vpop.f32.mrb[0].mxu0
    %v584 = vadd.f32 %v304, %v583
    %v585 = vpop.f32.mrb[0].mxu0
    %v586 = vadd.f32 %v308, %v585
    %587 = vdwg.mxu0
    %588 = vmatprep.subr.mxu0 %v110
    %589 = vmatpush1.msra.mxu0 %v109
    %590 = vmatprep.subr.mxu0 %v116
    %591 = vmatpush1.msra.mxu0 %v115
    %592 = vmatprep.subr.mxu0 %v122
    %593 = vmatpush1.msra.mxu0 %v121
    %594 = vmatprep.subr.mxu0 %v128
    %595 = vmatpush1.msra.mxu0 %v127
    %596 = vmatprep.subr.mxu0 %v134
    %597 = vmatpush1.msra.mxu0 %v133
    %598 = vmatprep.subr.mxu0 %v140
    %599 = vmatpush1.msra.mxu0 %v139
    %600 = vmatprep.subr.mxu0 %v146
    %601 = vmatpush1.msra.mxu0 %v145
    %602 = vmatprep.subr.mxu0 %v152
    %603 = vmatpush1.msra.mxu0 %v151
    %604 = vmatprep.subr.mxu0 %v158
    %605 = vmatpush1.msra.mxu0 %v157
    %606 = vmatprep.subr.mxu0 %v164
    %607 = vmatpush1.msra.mxu0 %v163
    %608 = vmatprep.subr.mxu0 %v170
    %609 = vmatpush1.msra.mxu0 %v169
    %610 = vmatprep.subr.mxu0 %v176
    %611 = vmatpush1.msra.mxu0 %v175
    %612 = vmatprep.subr.mxu0 %v182
    %613 = vmatpush1.msra.mxu0 %v181
    %614 = vmatprep.subr.mxu0 %v188
    %615 = vmatpush1.msra.mxu0 %v187
    %616 = vmatprep.subr.mxu0 %v194
    %617 = vmatpush1.msra.mxu0 %v193
    %618 = vmatprep.subr.mxu0 %v200
    %619 = vmatpush1.msra.mxu0 %v199
    %620 = vmatprep.subr.mxu0 %v206
    %621 = vmatpush1.msra.mxu0 %v205
    %622 = vmatprep.subr.mxu0 %v212
    %623 = vmatpush1.msra.mxu0 %v211
    %624 = vmatprep.subr.mxu0 %v218
    %625 = vmatpush1.msra.mxu0 %v217
    %626 = vmatprep.subr.mxu0 %v224
    %627 = vmatpush1.msra.mxu0 %v223
    %628 = vmatprep.subr.mxu0 %v230
    %629 = vmatpush1.msra.mxu0 %v229
    %630 = vmatprep.subr.mxu0 %v236
    %631 = vmatpush1.msra.mxu0 %v235
    %632 = vmatprep.subr.mxu0 %v242
    %633 = vmatpush1.msra.mxu0 %v241
    %634 = vmatprep.subr.mxu0 %v248
    %635 = vmatpush1.msra.mxu0 %v247
    %636 = vmatprep.subr.mxu0 %v254
    %637 = vmatpush1.msra.mxu0 %v253
    %638 = vmatprep.subr.mxu0 %v260
    %639 = vmatpush1.msra.mxu0 %v259
    %640 = vmatprep.subr.mxu0 %v266
    %641 = vmatpush1.msra.mxu0 %v265
    %642 = vmatprep.subr.mxu0 %v272
    %643 = vmatpush1.msra.mxu0 %v271
    %644 = vmatprep.subr.mxu0 %v278
    %645 = vmatpush1.msra.mxu0 %v277
    %646 = vmatprep.subr.mxu0 %v284
    %647 = vmatpush1.msra.mxu0 %v283
    %648 = vmatprep.subr.mxu0 %v290
    %649 = vmatpush1.msra.mxu0 %v289
    %650 = vmatprep.subr.mxu0 %v296
    %651 = vmatpush1.msra.mxu0 %v295
    %652 = vmatprep.mubr.f32.mxu0 %v44
    %653 = vmatmul.mubr.f32.gmra.mrb[0].mxu0 %v43
    %v654 = vpop.f32.mrb[0].mxu0
    %v655 = vadd.f32 %v312, %v654
    %v656 = vpop.f32.mrb[0].mxu0
    %v657 = vadd.f32 %v316, %v656
    %658 = vmatprep.mubr.f32.mxu0 %v46
    %659 = vmatmul.mubr.f32.gmra.mrb[0].mxu0 %v45
    %v660 = vpop.f32.mrb[0].mxu0
    %v661 = vadd.f32 %v312, %v660
    %v662 = vpop.f32.mrb[0].mxu0
    %v663 = vadd.f32 %v316, %v662
    %664 = vmatprep.mubr.f32.mxu0 %v48
    %665 = vmatmul.mubr.f32.gmra.mrb[0].mxu0 %v47
    %v666 = vpop.f32.mrb[0].mxu0
    %v667 = vadd.f32 %v312, %v666
    %v668 = vpop.f32.mrb[0].mxu0
    %v669 = vadd.f32 %v316, %v668
    %670 = vmatprep.mubr.f32.mxu0 %v50
    %671 = vmatmul.mubr.f32.gmra.mrb[0].mxu0 %v49
    %v672 = vpop.f32.mrb[0].mxu0
    %v673 = vadd.f32 %v312, %v672
    %v674 = vpop.f32.mrb[0].mxu0
    %v675 = vadd.f32 %v316, %v674
    %676 = vmatprep.mubr.f32.mxu0 %v52
    %677 = vmatmul.mubr.f32.gmra.mrb[0].mxu0 %v51
    %v678 = vpop.f32.mrb[0].mxu0
    %v679 = vadd.f32 %v312, %v678
    %v680 = vpop.f32.mrb[0].mxu0
    %v681 = vadd.f32 %v316, %v680
    %682 = vmatprep.mubr.f32.mxu0 %v54
    %683 = vmatmul.mubr.f32.gmra.mrb[0].mxu0 %v53
    %v684 = vpop.f32.mrb[0].mxu0
    %v685 = vadd.f32 %v312, %v684
    %v686 = vpop.f32.mrb[0].mxu0
    %v687 = vadd.f32 %v316, %v686
    %688 = vmatprep.mubr.f32.mxu0 %v56
    %689 = vmatmul.mubr.f32.gmra.mrb[0].mxu0 %v55
    %v690 = vpop.f32.mrb[0].mxu0
    %v691 = vadd.f32 %v312, %v690
    %v692 = vpop.f32.mrb[0].mxu0
    %v693 = vadd.f32 %v316, %v692
    %694 = vmatprep.mubr.f32.mxu0 %v58
    %695 = vmatmul.mubr.f32.gmra.mrb[0].mxu0 %v57
    %v696 = vpop.f32.mrb[0].mxu0
    %v697 = vadd.f32 %v312, %v696
    %v698 = vpop.f32.mrb[0].mxu0
    %v699 = vadd.f32 %v316, %v698
    %700 = vmatprep.mubr.f32.mxu0 %v60
    %701 = vmatmul.mubr.f32.gmra.mrb[0].mxu0 %v59
    %v702 = vpop.f32.mrb[0].mxu0
    %v703 = vadd.f32 %v312, %v702
    %v704 = vpop.f32.mrb[0].mxu0
    %v705 = vadd.f32 %v316, %v704
    %706 = vmatprep.mubr.f32.mxu0 %v62
    %707 = vmatmul.mubr.f32.gmra.mrb[0].mxu0 %v61
    %v708 = vpop.f32.mrb[0].mxu0
    %v709 = vadd.f32 %v312, %v708
    %v710 = vpop.f32.mrb[0].mxu0
    %v711 = vadd.f32 %v316, %v710
    %712 = vmatprep.mubr.f32.mxu0 %v64
    %713 = vmatmul.mubr.f32.gmra.mrb[0].mxu0 %v63
    %v714 = vpop.f32.mrb[0].mxu0
    %v715 = vadd.f32 %v312, %v714
    %v716 = vpop.f32.mrb[0].mxu0
    %v717 = vadd.f32 %v316, %v716
    %718 = vmatprep.mubr.f32.mxu0 %v66
    %719 = vmatmul.mubr.f32.gmra.mrb[0].mxu0 %v65
    %v720 = vpop.f32.mrb[0].mxu0
    %v721 = vadd.f32 %v312, %v720
    %v722 = vpop.f32.mrb[0].mxu0
    %v723 = vadd.f32 %v316, %v722
    %724 = vmatprep.mubr.f32.mxu0 %v68
    %725 = vmatmul.mubr.f32.gmra.mrb[0].mxu0 %v67
    %v726 = vpop.f32.mrb[0].mxu0
    %v727 = vadd.f32 %v312, %v726
    %v728 = vpop.f32.mrb[0].mxu0
    %v729 = vadd.f32 %v316, %v728
    %730 = vmatprep.mubr.f32.mxu0 %v70
    %731 = vmatmul.mubr.f32.gmra.mrb[0].mxu0 %v69
    %v732 = vpop.f32.mrb[0].mxu0
    %v733 = vadd.f32 %v312, %v732
    %v734 = vpop.f32.mrb[0].mxu0
    %v735 = vadd.f32 %v316, %v734
    %736 = vmatprep.mubr.f32.mxu0 %v72
    %737 = vmatmul.mubr.f32.gmra.mrb[0].mxu0 %v71
    %v738 = vpop.f32.mrb[0].mxu0
    %v739 = vadd.f32 %v312, %v738
    %v740 = vpop.f32.mrb[0].mxu0
    %v741 = vadd.f32 %v316, %v740
    %742 = vmatprep.mubr.f32.mxu0 %v74
    %743 = vmatmul.mubr.f32.gmra.mrb[0].mxu0 %v73
    %v744 = vpop.f32.mrb[0].mxu0
    %v745 = vadd.f32 %v312, %v744
    %v746 = vpop.f32.mrb[0].mxu0
    %v747 = vadd.f32 %v316, %v746
    %748 = vmatprep.mubr.f32.mxu0 %v76
    %749 = vmatmul.mubr.f32.gmra.mrb[0].mxu0 %v75
    %v750 = vpop.f32.mrb[0].mxu0
    %v751 = vadd.f32 %v312, %v750
    %v752 = vpop.f32.mrb[0].mxu0
    %v753 = vadd.f32 %v316, %v752
    %754 = vmatprep.mubr.f32.mxu0 %v78
    %755 = vmatmul.mubr.f32.gmra.mrb[0].mxu0 %v77
    %v756 = vpop.f32.mrb[0].mxu0
    %v757 = vadd.f32 %v312, %v756
    %v758 = vpop.f32.mrb[0].mxu0
    %v759 = vadd.f32 %v316, %v758
    %760 = vmatprep.mubr.f32.mxu0 %v80
    %761 = vmatmul.mubr.f32.gmra.mrb[0].mxu0 %v79
    %v762 = vpop.f32.mrb[0].mxu0
    %v763 = vadd.f32 %v312, %v762
    %v764 = vpop.f32.mrb[0].mxu0
    %v765 = vadd.f32 %v316, %v764
    %766 = vmatprep.mubr.f32.mxu0 %v82
    %767 = vmatmul.mubr.f32.gmra.mrb[0].mxu0 %v81
    %v768 = vpop.f32.mrb[0].mxu0
    %v769 = vadd.f32 %v312, %v768
    %v770 = vpop.f32.mrb[0].mxu0
    %v771 = vadd.f32 %v316, %v770
    %772 = vmatprep.mubr.f32.mxu0 %v84
    %773 = vmatmul.mubr.f32.gmra.mrb[0].mxu0 %v83
    %v774 = vpop.f32.mrb[0].mxu0
    %v775 = vadd.f32 %v312, %v774
    %v776 = vpop.f32.mrb[0].mxu0
    %v777 = vadd.f32 %v316, %v776
    %778 = vmatprep.mubr.f32.mxu0 %v86
    %779 = vmatmul.mubr.f32.gmra.mrb[0].mxu0 %v85
    %v780 = vpop.f32.mrb[0].mxu0
    %v781 = vadd.f32 %v312, %v780
    %v782 = vpop.f32.mrb[0].mxu0
    %v783 = vadd.f32 %v316, %v782
    %784 = vmatprep.mubr.f32.mxu0 %v88
    %785 = vmatmul.mubr.f32.gmra.mrb[0].mxu0 %v87
    %v786 = vpop.f32.mrb[0].mxu0
    %v787 = vadd.f32 %v312, %v786
    %v788 = vpop.f32.mrb[0].mxu0
    %v789 = vadd.f32 %v316, %v788
    %790 = vmatprep.mubr.f32.mxu0 %v90
    %791 = vmatmul.mubr.f32.gmra.mrb[0].mxu0 %v89
    %v792 = vpop.f32.mrb[0].mxu0
    %v793 = vadd.f32 %v312, %v792
    %v794 = vpop.f32.mrb[0].mxu0
    %v795 = vadd.f32 %v316, %v794
    %796 = vmatprep.mubr.f32.mxu0 %v92
    %797 = vmatmul.mubr.f32.gmra.mrb[0].mxu0 %v91
    %v798 = vpop.f32.mrb[0].mxu0
    %v799 = vadd.f32 %v312, %v798
    %v800 = vpop.f32.mrb[0].mxu0
    %v801 = vadd.f32 %v316, %v800
    %802 = vmatprep.mubr.f32.mxu0 %v94
    %803 = vmatmul.mubr.f32.gmra.mrb[0].mxu0 %v93
    %v804 = vpop.f32.mrb[0].mxu0
    %v805 = vadd.f32 %v312, %v804
    %v806 = vpop.f32.mrb[0].mxu0
    %v807 = vadd.f32 %v316, %v806
    %808 = vmatprep.mubr.f32.mxu0 %v96
    %809 = vmatmul.mubr.f32.gmra.mrb[0].mxu0 %v95
    %v810 = vpop.f32.mrb[0].mxu0
    %v811 = vadd.f32 %v312, %v810
    %v812 = vpop.f32.mrb[0].mxu0
    %v813 = vadd.f32 %v316, %v812
    %814 = vmatprep.mubr.f32.mxu0 %v98
    %815 = vmatmul.mubr.f32.gmra.mrb[0].mxu0 %v97
    %v816 = vpop.f32.mrb[0].mxu0
    %v817 = vadd.f32 %v312, %v816
    %v818 = vpop.f32.mrb[0].mxu0
    %v819 = vadd.f32 %v316, %v818
    %820 = vmatprep.mubr.f32.mxu0 %v100
    %821 = vmatmul.mubr.f32.gmra.mrb[0].mxu0 %v99
    %v822 = vpop.f32.mrb[0].mxu0
    %v823 = vadd.f32 %v312, %v822
    %v824 = vpop.f32.mrb[0].mxu0
    %v825 = vadd.f32 %v316, %v824
    %826 = vmatprep.mubr.f32.mxu0 %v102
    %827 = vmatmul.mubr.f32.gmra.mrb[0].mxu0 %v101
    %v828 = vpop.f32.mrb[0].mxu0
    %v829 = vadd.f32 %v312, %v828
    %v830 = vpop.f32.mrb[0].mxu0
    %v831 = vadd.f32 %v316, %v830
    %832 = vmatprep.mubr.f32.mxu0 %v104
    %833 = vmatmul.mubr.f32.gmra.mrb[0].mxu0 %v103
    %v834 = vpop.f32.mrb[0].mxu0
    %v835 = vadd.f32 %v312, %v834
    %v836 = vpop.f32.mrb[0].mxu0
    %v837 = vadd.f32 %v316, %v836
    %838 = vmatprep.mubr.f32.mxu0 %v106
    %839 = vmatmul.mubr.f32.gmra.mrb[0].mxu0 %v105
    %v840 = vpop.f32.mrb[0].mxu0
    %v841 = vadd.f32 %v312, %v840
    %v842 = vpop.f32.mrb[0].mxu0
    %v843 = vadd.f32 %v316, %v842
    %844 = vdwg.mxu0
    %845 = vmatprep.subr.mxu0 %v112
    %846 = vmatpush1.msra.mxu0 %v111
    %847 = vmatprep.subr.mxu0 %v118
    %848 = vmatpush1.msra.mxu0 %v117
    %849 = vmatprep.subr.mxu0 %v124
    %850 = vmatpush1.msra.mxu0 %v123
    %851 = vmatprep.subr.mxu0 %v130
    %852 = vmatpush1.msra.mxu0 %v129
    %853 = vmatprep.subr.mxu0 %v136
    %854 = vmatpush1.msra.mxu0 %v135
    %855 = vmatprep.subr.mxu0 %v142
    %856 = vmatpush1.msra.mxu0 %v141
    %857 = vmatprep.subr.mxu0 %v148
    %858 = vmatpush1.msra.mxu0 %v147
    %859 = vmatprep.subr.mxu0 %v154
    %860 = vmatpush1.msra.mxu0 %v153
    %861 = vmatprep.subr.mxu0 %v160
    %862 = vmatpush1.msra.mxu0 %v159
    %863 = vmatprep.subr.mxu0 %v166
    %864 = vmatpush1.msra.mxu0 %v165
    %865 = vmatprep.subr.mxu0 %v172
    %866 = vmatpush1.msra.mxu0 %v171
    %867 = vmatprep.subr.mxu0 %v178
    %868 = vmatpush1.msra.mxu0 %v177
    %869 = vmatprep.subr.mxu0 %v184
    %870 = vmatpush1.msra.mxu0 %v183
    %871 = vmatprep.subr.mxu0 %v190
    %872 = vmatpush1.msra.mxu0 %v189
    %873 = vmatprep.subr.mxu0 %v196
    %874 = vmatpush1.msra.mxu0 %v195
    %875 = vmatprep.subr.mxu0 %v202
    %876 = vmatpush1.msra.mxu0 %v201
    %877 = vmatprep.subr.mxu0 %v208
    %878 = vmatpush1.msra.mxu0 %v207
    %879 = vmatprep.subr.mxu0 %v214
    %880 = vmatpush1.msra.mxu0 %v213
    %881 = vmatprep.subr.mxu0 %v220
    %882 = vmatpush1.msra.mxu0 %v219
    %883 = vmatprep.subr.mxu0 %v226
    %884 = vmatpush1.msra.mxu0 %v225
    %885 = vmatprep.subr.mxu0 %v232
    %886 = vmatpush1.msra.mxu0 %v231
    %887 = vmatprep.subr.mxu0 %v238
    %888 = vmatpush1.msra.mxu0 %v237
    %889 = vmatprep.subr.mxu0 %v244
    %890 = vmatpush1.msra.mxu0 %v243
    %891 = vmatprep.subr.mxu0 %v250
    %892 = vmatpush1.msra.mxu0 %v249
    %893 = vmatprep.subr.mxu0 %v256
    %894 = vmatpush1.msra.mxu0 %v255
    %895 = vmatprep.subr.mxu0 %v262
    %896 = vmatpush1.msra.mxu0 %v261
    %897 = vmatprep.subr.mxu0 %v268
    %898 = vmatpush1.msra.mxu0 %v267
    %899 = vmatprep.subr.mxu0 %v274
    %900 = vmatpush1.msra.mxu0 %v273
    %901 = vmatprep.subr.mxu0 %v280
    %902 = vmatpush1.msra.mxu0 %v279
    %903 = vmatprep.subr.mxu0 %v286
    %904 = vmatpush1.msra.mxu0 %v285
    %905 = vmatprep.subr.mxu0 %v292
    %906 = vmatpush1.msra.mxu0 %v291
    %907 = vmatprep.subr.mxu0 %v298
    %908 = vmatpush1.msra.mxu0 %v297
    %909 = vmatprep.mubr.f32.mxu0 %v44
    %910 = vmatmul.mubr.f32.gmra.mrb[0].mxu0 %v43
    %v911 = vpop.f32.mrb[0].mxu0
    %v912 = vadd.f32 %v320, %v911
    %v913 = vpop.f32.mrb[0].mxu0
    %v914 = vadd.f32 %v324, %v913
    %915 = vmatprep.mubr.f32.mxu0 %v46
    %916 = vmatmul.mubr.f32.gmra.mrb[0].mxu0 %v45
    %v917 = vpop.f32.mrb[0].mxu0
    %v918 = vadd.f32 %v320, %v917
    %v919 = vpop.f32.mrb[0].mxu0
    %v920 = vadd.f32 %v324, %v919
    %921 = vmatprep.mubr.f32.mxu0 %v48
    %922 = vmatmul.mubr.f32.gmra.mrb[0].mxu0 %v47
    %v923 = vpop.f32.mrb[0].mxu0
    %v924 = vadd.f32 %v320, %v923
    %v925 = vpop.f32.mrb[0].mxu0
    %v926 = vadd.f32 %v324, %v925
    %927 = vmatprep.mubr.f32.mxu0 %v50
    %928 = vmatmul.mubr.f32.gmra.mrb[0].mxu0 %v49
    %v929 = vpop.f32.mrb[0].mxu0
    %v930 = vadd.f32 %v320, %v929
    %v931 = vpop.f32.mrb[0].mxu0
    %v932 = vadd.f32 %v324, %v931
    %933 = vmatprep.mubr.f32.mxu0 %v52
    %934 = vmatmul.mubr.f32.gmra.mrb[0].mxu0 %v51
    %v935 = vpop.f32.mrb[0].mxu0
    %v936 = vadd.f32 %v320, %v935
    %v937 = vpop.f32.mrb[0].mxu0
    %v938 = vadd.f32 %v324, %v937
    %939 = vmatprep.mubr.f32.mxu0 %v54
    %940 = vmatmul.mubr.f32.gmra.mrb[0].mxu0 %v53
    %v941 = vpop.f32.mrb[0].mxu0
    %v942 = vadd.f32 %v320, %v941
    %v943 = vpop.f32.mrb[0].mxu0
    %v944 = vadd.f32 %v324, %v943
    %945 = vmatprep.mubr.f32.mxu0 %v56
    %946 = vmatmul.mubr.f32.gmra.mrb[0].mxu0 %v55
    %v947 = vpop.f32.mrb[0].mxu0
    %v948 = vadd.f32 %v320, %v947
    %v949 = vpop.f32.mrb[0].mxu0
    %v950 = vadd.f32 %v324, %v949
    %951 = vmatprep.mubr.f32.mxu0 %v58
    %952 = vmatmul.mubr.f32.gmra.mrb[0].mxu0 %v57
    %v953 = vpop.f32.mrb[0].mxu0
    %v954 = vadd.f32 %v320, %v953
    %v955 = vpop.f32.mrb[0].mxu0
    %v956 = vadd.f32 %v324, %v955
    %957 = vmatprep.mubr.f32.mxu0 %v60
    %958 = vmatmul.mubr.f32.gmra.mrb[0].mxu0 %v59
    %v959 = vpop.f32.mrb[0].mxu0
    %v960 = vadd.f32 %v320, %v959
    %v961 = vpop.f32.mrb[0].mxu0
    %v962 = vadd.f32 %v324, %v961
    %963 = vmatprep.mubr.f32.mxu0 %v62
    %964 = vmatmul.mubr.f32.gmra.mrb[0].mxu0 %v61
    %v965 = vpop.f32.mrb[0].mxu0
    %v966 = vadd.f32 %v320, %v965
    %v967 = vpop.f32.mrb[0].mxu0
    %v968 = vadd.f32 %v324, %v967
    %969 = vmatprep.mubr.f32.mxu0 %v64
    %970 = vmatmul.mubr.f32.gmra.mrb[0].mxu0 %v63
    %v971 = vpop.f32.mrb[0].mxu0
    %v972 = vadd.f32 %v320, %v971
    %v973 = vpop.f32.mrb[0].mxu0
    %v974 = vadd.f32 %v324, %v973
    %975 = vmatprep.mubr.f32.mxu0 %v66
    %976 = vmatmul.mubr.f32.gmra.mrb[0].mxu0 %v65
    %v977 = vpop.f32.mrb[0].mxu0
    %v978 = vadd.f32 %v320, %v977
    %v979 = vpop.f32.mrb[0].mxu0
    %v980 = vadd.f32 %v324, %v979
    %981 = vmatprep.mubr.f32.mxu0 %v68
    %982 = vmatmul.mubr.f32.gmra.mrb[0].mxu0 %v67
    %v983 = vpop.f32.mrb[0].mxu0
    %v984 = vadd.f32 %v320, %v983
    %v985 = vpop.f32.mrb[0].mxu0
    %v986 = vadd.f32 %v324, %v985
    %987 = vmatprep.mubr.f32.mxu0 %v70
    %988 = vmatmul.mubr.f32.gmra.mrb[0].mxu0 %v69
    %v989 = vpop.f32.mrb[0].mxu0
    %v990 = vadd.f32 %v320, %v989
    %v991 = vpop.f32.mrb[0].mxu0
    %v992 = vadd.f32 %v324, %v991
    %993 = vmatprep.mubr.f32.mxu0 %v72
    %994 = vmatmul.mubr.f32.gmra.mrb[0].mxu0 %v71
    %v995 = vpop.f32.mrb[0].mxu0
    %v996 = vadd.f32 %v320, %v995
    %v997 = vpop.f32.mrb[0].mxu0
    %v998 = vadd.f32 %v324, %v997
    %999 = vmatprep.mubr.f32.mxu0 %v74
    %1000 = vmatmul.mubr.f32.gmra.mrb[0].mxu0 %v73
    %v1001 = vpop.f32.mrb[0].mxu0
    %v1002 = vadd.f32 %v320, %v1001
    %v1003 = vpop.f32.mrb[0].mxu0
    %v1004 = vadd.f32 %v324, %v1003
    %1005 = vmatprep.mubr.f32.mxu0 %v76
    %1006 = vmatmul.mubr.f32.gmra.mrb[0].mxu0 %v75
    %v1007 = vpop.f32.mrb[0].mxu0
    %v1008 = vadd.f32 %v320, %v1007
    %v1009 = vpop.f32.mrb[0].mxu0
    %v1010 = vadd.f32 %v324, %v1009
    %1011 = vmatprep.mubr.f32.mxu0 %v78
    %1012 = vmatmul.mubr.f32.gmra.mrb[0].mxu0 %v77
    %v1013 = vpop.f32.mrb[0].mxu0
    %v1014 = vadd.f32 %v320, %v1013
    %v1015 = vpop.f32.mrb[0].mxu0
    %v1016 = vadd.f32 %v324, %v1015
    %1017 = vmatprep.mubr.f32.mxu0 %v80
    %1018 = vmatmul.mubr.f32.gmra.mrb[0].mxu0 %v79
    %v1019 = vpop.f32.mrb[0].mxu0
    %v1020 = vadd.f32 %v320, %v1019
    %v1021 = vpop.f32.mrb[0].mxu0
    %v1022 = vadd.f32 %v324, %v1021
    %1023 = vmatprep.mubr.f32.mxu0 %v82
    %1024 = vmatmul.mubr.f32.gmra.mrb[0].mxu0 %v81
    %v1025 = vpop.f32.mrb[0].mxu0
    %v1026 = vadd.f32 %v320, %v1025
    %v1027 = vpop.f32.mrb[0].mxu0
    %v1028 = vadd.f32 %v324, %v1027
    %1029 = vmatprep.mubr.f32.mxu0 %v84
    %1030 = vmatmul.mubr.f32.gmra.mrb[0].mxu0 %v83
    %v1031 = vpop.f32.mrb[0].mxu0
    %v1032 = vadd.f32 %v320, %v1031
    %v1033 = vpop.f32.mrb[0].mxu0
    %v1034 = vadd.f32 %v324, %v1033
    %1035 = vmatprep.mubr.f32.mxu0 %v86
    %1036 = vmatmul.mubr.f32.gmra.mrb[0].mxu0 %v85
    %v1037 = vpop.f32.mrb[0].mxu0
    %v1038 = vadd.f32 %v320, %v1037
    %v1039 = vpop.f32.mrb[0].mxu0
    %v1040 = vadd.f32 %v324, %v1039
    %1041 = vmatprep.mubr.f32.mxu0 %v88
    %1042 = vmatmul.mubr.f32.gmra.mrb[0].mxu0 %v87
    %v1043 = vpop.f32.mrb[0].mxu0
    %v1044 = vadd.f32 %v320, %v1043
    %v1045 = vpop.f32.mrb[0].mxu0
    %v1046 = vadd.f32 %v324, %v1045
    %1047 = vmatprep.mubr.f32.mxu0 %v90
    %1048 = vmatmul.mubr.f32.gmra.mrb[0].mxu0 %v89
    %v1049 = vpop.f32.mrb[0].mxu0
    %v1050 = vadd.f32 %v320, %v1049
    %v1051 = vpop.f32.mrb[0].mxu0
    %v1052 = vadd.f32 %v324, %v1051
    %1053 = vmatprep.mubr.f32.mxu0 %v92
    %1054 = vmatmul.mubr.f32.gmra.mrb[0].mxu0 %v91
    %v1055 = vpop.f32.mrb[0].mxu0
    %v1056 = vadd.f32 %v320, %v1055
    %v1057 = vpop.f32.mrb[0].mxu0
    %v1058 = vadd.f32 %v324, %v1057
    %1059 = vmatprep.mubr.f32.mxu0 %v94
    %1060 = vmatmul.mubr.f32.gmra.mrb[0].mxu0 %v93
    %v1061 = vpop.f32.mrb[0].mxu0
    %v1062 = vadd.f32 %v320, %v1061
    %v1063 = vpop.f32.mrb[0].mxu0
    %v1064 = vadd.f32 %v324, %v1063
    %1065 = vmatprep.mubr.f32.mxu0 %v96
    %1066 = vmatmul.mubr.f32.gmra.mrb[0].mxu0 %v95
    %v1067 = vpop.f32.mrb[0].mxu0
    %v1068 = vadd.f32 %v320, %v1067
    %v1069 = vpop.f32.mrb[0].mxu0
    %v1070 = vadd.f32 %v324, %v1069
    %1071 = vmatprep.mubr.f32.mxu0 %v98
    %1072 = vmatmul.mubr.f32.gmra.mrb[0].mxu0 %v97
    %v1073 = vpop.f32.mrb[0].mxu0
    %v1074 = vadd.f32 %v320, %v1073
    %v1075 = vpop.f32.mrb[0].mxu0
    %v1076 = vadd.f32 %v324, %v1075
    %1077 = vmatprep.mubr.f32.mxu0 %v100
    %1078 = vmatmul.mubr.f32.gmra.mrb[0].mxu0 %v99
    %v1079 = vpop.f32.mrb[0].mxu0
    %v1080 = vadd.f32 %v320, %v1079
    %v1081 = vpop.f32.mrb[0].mxu0
    %v1082 = vadd.f32 %v324, %v1081
    %1083 = vmatprep.mubr.f32.mxu0 %v102
    %1084 = vmatmul.mubr.f32.gmra.mrb[0].mxu0 %v101
    %v1085 = vpop.f32.mrb[0].mxu0
    %v1086 = vadd.f32 %v320, %v1085
    %v1087 = vpop.f32.mrb[0].mxu0
    %v1088 = vadd.f32 %v324, %v1087
    %1089 = vmatprep.mubr.f32.mxu0 %v104
    %1090 = vmatmul.mubr.f32.gmra.mrb[0].mxu0 %v103
    %v1091 = vpop.f32.mrb[0].mxu0
    %v1092 = vadd.f32 %v320, %v1091
    %v1093 = vpop.f32.mrb[0].mxu0
    %v1094 = vadd.f32 %v324, %v1093
    %1095 = vmatprep.mubr.f32.mxu0 %v106
    %1096 = vmatmul.mubr.f32.gmra.mrb[0].mxu0 %v105
    %v1097 = vpop.f32.mrb[0].mxu0
    %v1098 = vadd.f32 %v320, %v1097
    %v1099 = vpop.f32.mrb[0].mxu0
    %v1100 = vadd.f32 %v324, %v1099
    %1101 = vdwg.mxu0
    %1102 = vst [vmem:[#allocation7] sm:$0xff] %v398
    %1103 = vst [vmem:[#allocation7 + $0x8] sm:$0xff] %v400
    %1104 = vst [vmem:[#allocation7 + $0x10] sm:$0xff] %v655
    %1105 = vst [vmem:[#allocation7 + $0x18] sm:$0xff] %v657
    %1106 = vst [vmem:[#allocation7 + $0x20] sm:$0xff] %v912
    %1107 = vst [vmem:[#allocation7 + $0x28] sm:$0xff] %v914
    %1108 = vst [vmem:[#allocation7 + $0x30] sm:$0xff] %v404
    %1109 = vst [vmem:[#allocation7 + $0x38] sm:$0xff] %v406
    %1110 = vst [vmem:[#allocation7 + $0x40] sm:$0xff] %v661
    %1111 = vst [vmem:[#allocation7 + $0x48] sm:$0xff] %v663
    %1112 = vst [vmem:[#allocation7 + $0x50] sm:$0xff] %v918
    %1113 = vst [vmem:[#allocation7 + $0x58] sm:$0xff] %v920
    %1114 = vst [vmem:[#allocation7 + $0x60] sm:$0xff] %v410
    %1115 = vst [vmem:[#allocation7 + $0x68] sm:$0xff] %v412
    %1116 = vst [vmem:[#allocation7 + $0x70] sm:$0xff] %v667
    %1117 = vst [vmem:[#allocation7 + $0x78] sm:$0xff] %v669
    %1118 = vst [vmem:[#allocation7 + $0x80] sm:$0xff] %v924
    %1119 = vst [vmem:[#allocation7 + $0x88] sm:$0xff] %v926
    %1120 = vst [vmem:[#allocation7 + $0x90] sm:$0xff] %v416
    %1121 = vst [vmem:[#allocation7 + $0x98] sm:$0xff] %v418
    %1122 = vst [vmem:[#allocation7 + $0xa0] sm:$0xff] %v673
    %1123 = vst [vmem:[#allocation7 + $0xa8] sm:$0xff] %v675
    %1124 = vst [vmem:[#allocation7 + $0xb0] sm:$0xff] %v930
    %1125 = vst [vmem:[#allocation7 + $0xb8] sm:$0xff] %v932
    %1126 = vst [vmem:[#allocation7 + $0xc0] sm:$0xff] %v422
    %1127 = vst [vmem:[#allocation7 + $0xc8] sm:$0xff] %v424
    %1128 = vst [vmem:[#allocation7 + $0xd0] sm:$0xff] %v679
    %1129 = vst [vmem:[#allocation7 + $0xd8] sm:$0xff] %v681
    %1130 = vst [vmem:[#allocation7 + $0xe0] sm:$0xff] %v936
    %1131 = vst [vmem:[#allocation7 + $0xe8] sm:$0xff] %v938
    %1132 = vst [vmem:[#allocation7 + $0xf0] sm:$0xff] %v428
    %1133 = vst [vmem:[#allocation7 + $0xf8] sm:$0xff] %v430
    %1134 = vst [vmem:[#allocation7 + $0x100] sm:$0xff] %v685
    %1135 = vst [vmem:[#allocation7 + $0x108] sm:$0xff] %v687
    %1136 = vst [vmem:[#allocation7 + $0x110] sm:$0xff] %v942
    %1137 = vst [vmem:[#allocation7 + $0x118] sm:$0xff] %v944
    %1138 = vst [vmem:[#allocation7 + $0x120] sm:$0xff] %v434
    %1139 = vst [vmem:[#allocation7 + $0x128] sm:$0xff] %v436
    %1140 = vst [vmem:[#allocation7 + $0x130] sm:$0xff] %v691
    %1141 = vst [vmem:[#allocation7 + $0x138] sm:$0xff] %v693
    %1142 = vst [vmem:[#allocation7 + $0x140] sm:$0xff] %v948
    %1143 = vst [vmem:[#allocation7 + $0x148] sm:$0xff] %v950
    %1144 = vst [vmem:[#allocation7 + $0x150] sm:$0xff] %v440
    %1145 = vst [vmem:[#allocation7 + $0x158] sm:$0xff] %v442
    %1146 = vst [vmem:[#allocation7 + $0x160] sm:$0xff] %v697
    %1147 = vst [vmem:[#allocation7 + $0x168] sm:$0xff] %v699
    %1148 = vst [vmem:[#allocation7 + $0x170] sm:$0xff] %v954
    %1149 = vst [vmem:[#allocation7 + $0x178] sm:$0xff] %v956
    %1150 = vst [vmem:[#allocation7 + $0x180] sm:$0xff] %v446
    %1151 = vst [vmem:[#allocation7 + $0x188] sm:$0xff] %v448
    %1152 = vst [vmem:[#allocation7 + $0x190] sm:$0xff] %v703
    %1153 = vst [vmem:[#allocation7 + $0x198] sm:$0xff] %v705
    %1154 = vst [vmem:[#allocation7 + $0x1a0] sm:$0xff] %v960
    %1155 = vst [vmem:[#allocation7 + $0x1a8] sm:$0xff] %v962
    %1156 = vst [vmem:[#allocation7 + $0x1b0] sm:$0xff] %v452
    %1157 = vst [vmem:[#allocation7 + $0x1b8] sm:$0xff] %v454
    %1158 = vst [vmem:[#allocation7 + $0x1c0] sm:$0xff] %v709
    %1159 = vst [vmem:[#allocation7 + $0x1c8] sm:$0xff] %v711
    %1160 = vst [vmem:[#allocation7 + $0x1d0] sm:$0xff] %v966
    %1161 = vst [vmem:[#allocation7 + $0x1d8] sm:$0xff] %v968
    %1162 = vst [vmem:[#allocation7 + $0x1e0] sm:$0xff] %v458
    %1163 = vst [vmem:[#allocation7 + $0x1e8] sm:$0xff] %v460
    %1164 = vst [vmem:[#allocation7 + $0x1f0] sm:$0xff] %v715
    %1165 = vst [vmem:[#allocation7 + $0x1f8] sm:$0xff] %v717
    %1166 = vst [vmem:[#allocation7 + $0x200] sm:$0xff] %v972
    %1167 = vst [vmem:[#allocation7 + $0x208] sm:$0xff] %v974
    %1168 = vst [vmem:[#allocation7 + $0x210] sm:$0xff] %v464
    %1169 = vst [vmem:[#allocation7 + $0x218] sm:$0xff] %v466
    %1170 = vst [vmem:[#allocation7 + $0x220] sm:$0xff] %v721
    %1171 = vst [vmem:[#allocation7 + $0x228] sm:$0xff] %v723
    %1172 = vst [vmem:[#allocation7 + $0x230] sm:$0xff] %v978
    %1173 = vst [vmem:[#allocation7 + $0x238] sm:$0xff] %v980
    %1174 = vst [vmem:[#allocation7 + $0x240] sm:$0xff] %v470
    %1175 = vst [vmem:[#allocation7 + $0x248] sm:$0xff] %v472
    %1176 = vst [vmem:[#allocation7 + $0x250] sm:$0xff] %v727
    %1177 = vst [vmem:[#allocation7 + $0x258] sm:$0xff] %v729
    %1178 = vst [vmem:[#allocation7 + $0x260] sm:$0xff] %v984
    %1179 = vst [vmem:[#allocation7 + $0x268] sm:$0xff] %v986
    %1180 = vst [vmem:[#allocation7 + $0x270] sm:$0xff] %v476
    %1181 = vst [vmem:[#allocation7 + $0x278] sm:$0xff] %v478
    %1182 = vst [vmem:[#allocation7 + $0x280] sm:$0xff] %v733
    %1183 = vst [vmem:[#allocation7 + $0x288] sm:$0xff] %v735
    %1184 = vst [vmem:[#allocation7 + $0x290] sm:$0xff] %v990
    %1185 = vst [vmem:[#allocation7 + $0x298] sm:$0xff] %v992
    %1186 = vst [vmem:[#allocation7 + $0x2a0] sm:$0xff] %v482
    %1187 = vst [vmem:[#allocation7 + $0x2a8] sm:$0xff] %v484
    %1188 = vst [vmem:[#allocation7 + $0x2b0] sm:$0xff] %v739
    %1189 = vst [vmem:[#allocation7 + $0x2b8] sm:$0xff] %v741
    %1190 = vst [vmem:[#allocation7 + $0x2c0] sm:$0xff] %v996
    %1191 = vst [vmem:[#allocation7 + $0x2c8] sm:$0xff] %v998
    %1192 = vst [vmem:[#allocation7 + $0x2d0] sm:$0xff] %v488
    %1193 = vst [vmem:[#allocation7 + $0x2d8] sm:$0xff] %v490
    %1194 = vst [vmem:[#allocation7 + $0x2e0] sm:$0xff] %v745
    %1195 = vst [vmem:[#allocation7 + $0x2e8] sm:$0xff] %v747
    %1196 = vst [vmem:[#allocation7 + $0x2f0] sm:$0xff] %v1002
    %1197 = vst [vmem:[#allocation7 + $0x2f8] sm:$0xff] %v1004
    %1198 = vst [vmem:[#allocation7 + $0x300] sm:$0xff] %v494
    %1199 = vst [vmem:[#allocation7 + $0x308] sm:$0xff] %v496
    %1200 = vst [vmem:[#allocation7 + $0x310] sm:$0xff] %v751
    %1201 = vst [vmem:[#allocation7 + $0x318] sm:$0xff] %v753
    %1202 = vst [vmem:[#allocation7 + $0x320] sm:$0xff] %v1008
    %1203 = vst [vmem:[#allocation7 + $0x328] sm:$0xff] %v1010
    %1204 = vst [vmem:[#allocation7 + $0x330] sm:$0xff] %v500
    %1205 = vst [vmem:[#allocation7 + $0x338] sm:$0xff] %v502
    %1206 = vst [vmem:[#allocation7 + $0x340] sm:$0xff] %v757
    %1207 = vst [vmem:[#allocation7 + $0x348] sm:$0xff] %v759
    %1208 = vst [vmem:[#allocation7 + $0x350] sm:$0xff] %v1014
    %1209 = vst [vmem:[#allocation7 + $0x358] sm:$0xff] %v1016
    %1210 = vst [vmem:[#allocation7 + $0x360] sm:$0xff] %v506
    %1211 = vst [vmem:[#allocation7 + $0x368] sm:$0xff] %v508
    %1212 = vst [vmem:[#allocation7 + $0x370] sm:$0xff] %v763
    %1213 = vst [vmem:[#allocation7 + $0x378] sm:$0xff] %v765
    %1214 = vst [vmem:[#allocation7 + $0x380] sm:$0xff] %v1020
    %1215 = vst [vmem:[#allocation7 + $0x388] sm:$0xff] %v1022
    %1216 = vst [vmem:[#allocation7 + $0x390] sm:$0xff] %v512
    %1217 = vst [vmem:[#allocation7 + $0x398] sm:$0xff] %v514
    %1218 = vst [vmem:[#allocation7 + $0x3a0] sm:$0xff] %v769
    %1219 = vst [vmem:[#allocation7 + $0x3a8] sm:$0xff] %v771
    %1220 = vst [vmem:[#allocation7 + $0x3b0] sm:$0xff] %v1026
    %1221 = vst [vmem:[#allocation7 + $0x3b8] sm:$0xff] %v1028
    %1222 = vst [vmem:[#allocation7 + $0x3c0] sm:$0xff] %v518
    %1223 = vst [vmem:[#allocation7 + $0x3c8] sm:$0xff] %v520
    %1224 = vst [vmem:[#allocation7 + $0x3d0] sm:$0xff] %v775
    %1225 = vst [vmem:[#allocation7 + $0x3d8] sm:$0xff] %v777
    %1226 = vst [vmem:[#allocation7 + $0x3e0] sm:$0xff] %v1032
    %1227 = vst [vmem:[#allocation7 + $0x3e8] sm:$0xff] %v1034
    %1228 = vst [vmem:[#allocation7 + $0x3f0] sm:$0xff] %v524
    %1229 = vst [vmem:[#allocation7 + $0x3f8] sm:$0xff] %v526
    %1230 = vst [vmem:[#allocation7 + $0x400] sm:$0xff] %v781
    %1231 = vst [vmem:[#allocation7 + $0x408] sm:$0xff] %v783
    %1232 = vst [vmem:[#allocation7 + $0x410] sm:$0xff] %v1038
    %1233 = vst [vmem:[#allocation7 + $0x418] sm:$0xff] %v1040
    %1234 = vst [vmem:[#allocation7 + $0x420] sm:$0xff] %v530
    %1235 = vst [vmem:[#allocation7 + $0x428] sm:$0xff] %v532
    %1236 = vst [vmem:[#allocation7 + $0x430] sm:$0xff] %v787
    %1237 = vst [vmem:[#allocation7 + $0x438] sm:$0xff] %v789
    %1238 = vst [vmem:[#allocation7 + $0x440] sm:$0xff] %v1044
    %1239 = vst [vmem:[#allocation7 + $0x448] sm:$0xff] %v1046
    %1240 = vst [vmem:[#allocation7 + $0x450] sm:$0xff] %v536
    %1241 = vst [vmem:[#allocation7 + $0x458] sm:$0xff] %v538
    %1242 = vst [vmem:[#allocation7 + $0x460] sm:$0xff] %v793
    %1243 = vst [vmem:[#allocation7 + $0x468] sm:$0xff] %v795
    %1244 = vst [vmem:[#allocation7 + $0x470] sm:$0xff] %v1050
    %1245 = vst [vmem:[#allocation7 + $0x478] sm:$0xff] %v1052
    %1246 = vst [vmem:[#allocation7 + $0x480] sm:$0xff] %v542
    %1247 = vst [vmem:[#allocation7 + $0x488] sm:$0xff] %v544
    %1248 = vst [vmem:[#allocation7 + $0x490] sm:$0xff] %v799
    %1249 = vst [vmem:[#allocation7 + $0x498] sm:$0xff] %v801
    %1250 = vst [vmem:[#allocation7 + $0x4a0] sm:$0xff] %v1056
    %1251 = vst [vmem:[#allocation7 + $0x4a8] sm:$0xff] %v1058
    %1252 = vst [vmem:[#allocation7 + $0x4b0] sm:$0xff] %v548
    %1253 = vst [vmem:[#allocation7 + $0x4b8] sm:$0xff] %v550
    %1254 = vst [vmem:[#allocation7 + $0x4c0] sm:$0xff] %v805
    %1255 = vst [vmem:[#allocation7 + $0x4c8] sm:$0xff] %v807
    %1256 = vst [vmem:[#allocation7 + $0x4d0] sm:$0xff] %v1062
    %1257 = vst [vmem:[#allocation7 + $0x4d8] sm:$0xff] %v1064
    %1258 = vst [vmem:[#allocation7 + $0x4e0] sm:$0xff] %v554
    %1259 = vst [vmem:[#allocation7 + $0x4e8] sm:$0xff] %v556
    %1260 = vst [vmem:[#allocation7 + $0x4f0] sm:$0xff] %v811
    %1261 = vst [vmem:[#allocation7 + $0x4f8] sm:$0xff] %v813
    %1262 = vst [vmem:[#allocation7 + $0x500] sm:$0xff] %v1068
    %1263 = vst [vmem:[#allocation7 + $0x508] sm:$0xff] %v1070
    %1264 = vst [vmem:[#allocation7 + $0x510] sm:$0xff] %v560
    %1265 = vst [vmem:[#allocation7 + $0x518] sm:$0xff] %v562
    %1266 = vst [vmem:[#allocation7 + $0x520] sm:$0xff] %v817
    %1267 = vst [vmem:[#allocation7 + $0x528] sm:$0xff] %v819
    %1268 = vst [vmem:[#allocation7 + $0x530] sm:$0xff] %v1074
    %1269 = vst [vmem:[#allocation7 + $0x538] sm:$0xff] %v1076
    %1270 = vst [vmem:[#allocation7 + $0x540] sm:$0xff] %v566
    %1271 = vst [vmem:[#allocation7 + $0x548] sm:$0xff] %v568
    %1272 = vst [vmem:[#allocation7 + $0x550] sm:$0xff] %v823
    %1273 = vst [vmem:[#allocation7 + $0x558] sm:$0xff] %v825
    %1274 = vst [vmem:[#allocation7 + $0x560] sm:$0xff] %v1080
    %1275 = vst [vmem:[#allocation7 + $0x568] sm:$0xff] %v1082
    %1276 = vst [vmem:[#allocation7 + $0x570] sm:$0xff] %v572
    %1277 = vst [vmem:[#allocation7 + $0x578] sm:$0xff] %v574
    %1278 = vst [vmem:[#allocation7 + $0x580] sm:$0xff] %v829
    %1279 = vst [vmem:[#allocation7 + $0x588] sm:$0xff] %v831
    %1280 = vst [vmem:[#allocation7 + $0x590] sm:$0xff] %v1086
    %1281 = vst [vmem:[#allocation7 + $0x598] sm:$0xff] %v1088
    %1282 = vst [vmem:[#allocation7 + $0x5a0] sm:$0xff] %v578
    %1283 = vst [vmem:[#allocation7 + $0x5a8] sm:$0xff] %v580
    %1284 = vst [vmem:[#allocation7 + $0x5b0] sm:$0xff] %v835
    %1285 = vst [vmem:[#allocation7 + $0x5b8] sm:$0xff] %v837
    %1286 = vst [vmem:[#allocation7 + $0x5c0] sm:$0xff] %v1092
    %1287 = vst [vmem:[#allocation7 + $0x5c8] sm:$0xff] %v1094
    %1288 = vst [vmem:[#allocation7 + $0x5d0] sm:$0xff] %v584
    %1289 = vst [vmem:[#allocation7 + $0x5d8] sm:$0xff] %v586
    %1290 = vst [vmem:[#allocation7 + $0x5e0] sm:$0xff] %v841
    %1291 = vst [vmem:[#allocation7 + $0x5e8] sm:$0xff] %v843
    %1292 = vst [vmem:[#allocation7 + $0x5f0] sm:$0xff] %v1098
    %1293 = vst [vmem:[#allocation7 + $0x5f8] sm:$0xff] %v1100
    // Predicated region
    $region22: #{tpu_custom_call.1} parent=1 // pred_check
      _
    $region23: #{tpu_custom_call.1} parent=1 // pred_check_branch
      %1295 = sbr.rel (0) target = $region25
    $region24: #{tpu_custom_call.1} parent=1 // pred_region
      %s1297 = ssub.s32 24576, 24576
      %1298 = vsyncadd [#allocation4], %s1297
      %s1299 = sshll.u32 [#allocation7], 4
      %s1300 = int_to_ptr.vmem [resolvable:$true] %s1299
      %1305 = dma.vmem_to_hbm [thread:$0]  %s1300, 24576, %s3, [#allocation4], 768, 768, 48
    $region25: #{tpu_custom_call.1} parent=1 // pred_fallthru
      _
    // Predicated region
    $region26: #{tpu_custom_call.1} parent=1 // pred_check
      _
    $region27: #{tpu_custom_call.1} parent=1 // pred_check_branch
      %1307 = sbr.rel (0) target = $region29
    $region28: #{tpu_custom_call.1} parent=1 // pred_region
      %1308 = dma.done [#allocation4], 24576
    $region29: #{tpu_custom_call.1} parent=1 // pred_fallthru
      _
    %1309 = vsyncpa [#allocation3], 1
    %1310 = vsyncpa [#allocation6], 1
    %1311 = vsyncpa [#allocation4], 1

</llo_original>
